<compile_context>
chip_gen: v7x
topology: tpu7x:2x2x1
jax: 0.10.0
libtpu: 0.0.40
codegen_flags: <defaults>
</compile_context>

<pallas_src>
import functools

import jax
import jax.numpy as jnp
from jax.experimental import pallas as pl
from jax.experimental.pallas import tpu as pltpu


# ---------------------------------------------------------------------------
# Config (small shapes consistent with the module: hidden_size=32 -> D=96)
# ---------------------------------------------------------------------------
HIDDEN_SIZE = 32
D_TRUE = 3 * HIDDEN_SIZE          # 96  sentence-feature width (3*hidden_size)
D_PAD = 128                       # lane-dense feature width inside the kernel
MLP_HIDDEN = 128                  # (1024 in the original; scaled down, lane-dense)
N_SENT = 8
R1, R2, R3 = 4, 8, 16
R_SUM = R1 + R2 + R3              # 28
R_PAD = 32                        # stacked hier-mat rows padded to 32
HIER1_CHILD_NUM = [2, 2, 2, 2]    # sums to R2
HIER2_CHILD_NUM = [2] * 8         # sums to R3
X_SCOPE = ((0, 4), (4, 8))        # 2 bags (static scopes)
N_BAGS = len(X_SCOPE)
LN_EPS = 1e-5

# column layout of the single packed (N, 128) output slab
COL_L1 = 0
COL_L2 = COL_L1 + R1
COL_L3 = COL_L2 + R2
COL_N1 = R_PAD                    # cols 28:32 are exact zeros (H pad rows)
COL_N2 = COL_N1 + R2
COL_P2 = COL_N2 + R3
COL_P3 = COL_P2 + R1
COL_CLS = COL_P3 + R2
COLS_USED = COL_CLS + R3          # 84 of 128


# ---------------------------------------------------------------------------
# Fused Pallas kernel: 3x MyHierRelLayer + next/prev logits + bag_att + classifier
# ---------------------------------------------------------------------------
def _softmax_lastdim(x):
    m = jnp.max(x, axis=-1, keepdims=True)
    e = jnp.exp(x - m)
    return e / jnp.sum(e, axis=-1, keepdims=True)   # exact recip for parity


def fused_model_kernel(d_true, x_scope,
                       s_ref, h_ref, wg_ref, w1_ref, w2_ref,
                       small_ref, expand_ref, wcls_ref, bcls_ref,
                       out_ref):
    f32 = jnp.float32
    bf16 = jnp.bfloat16

    S = s_ref[...]                                   # (N, Dp) f32, pad lanes 0
    n, dp = S.shape
    inv_d = 1.0 / float(d_true)
    lane = jax.lax.broadcasted_iota(jnp.int32, (1, dp), 1)
    lane_mask = (lane < d_true).astype(f32)

    H = h_ref[...]                                   # (R_PAD, Dp) f32: h1|h2|h3|0
    S16 = S.astype(bf16)

    # --- one MXU push for all three hier logits: S @ H_all^T -> (N, R_PAD)
    logits_all = jax.lax.dot_general(
        S16, H.astype(bf16), (((1,), (1,)), ((), ())),
        preferred_element_type=f32)

    seg = ((0, R1), (R1, R1 + R2), (R1 + R2, R_SUM))
    att = jnp.zeros((n, 1), f32)
    idxs, ys = [], []
    for l in range(3):                               # fully unrolled MyHierRelLayer
        lo, hi = seg[l]
        idx = _softmax_lastdim(logits_all[:, lo:hi])               # (N, R_l) f32
        idxs.append(idx)

        # hier_relation = hier_index @ hier_mat
        rel = jnp.dot(idx.astype(bf16), H[lo:hi].astype(bf16),
                      preferred_element_type=f32)                   # (N, Dp)

        small = small_ref[l]                                        # (4, Dp) f32
        bg, gamma, beta, watt = small[0:1], small[1:2], small[2:3], small[3:4]

        # gate: single K=2*Dp contraction of [S | rel] against [Wg_s ; Wg_r]
        srel = jnp.concatenate([S, rel], axis=-1).astype(bf16)      # (N, 2*Dp)
        gate = jnp.dot(srel, wg_ref[l], preferred_element_type=f32) + bg
        alpha = jax.nn.sigmoid(gate)
        context = alpha * S + (1.0 - alpha) * rel

        # MLP (mlp_bias=False) + residual
        mid = jnp.maximum(
            jnp.dot(context.astype(bf16), w1_ref[l], preferred_element_type=f32),
            0.0)
        out = jnp.dot(mid.astype(bf16), w2_ref[l], preferred_element_type=f32) + S

        # add & LayerNorm over the TRUE width, two-pass variance (pad lanes masked)
        mu = jnp.sum(out, axis=-1, keepdims=True) * inv_d           # out pad lanes = 0
        diff = out - mu
        dm = diff * lane_mask
        var = jnp.sum(dm * dm, axis=-1, keepdims=True) * inv_d
        y = diff * jax.lax.rsqrt(var + LN_EPS) * gamma + beta       # pad lanes -> 0
        ys.append(y)

        # bag-attention score accumulated per layer block (no 3*Dp slab to HBM)
        att = att + jnp.sum(y * watt, axis=-1, keepdims=True)       # (N, 1)

    # --- next/prev bookkeeping: ONE block-structured matmul (matches PyTorch:
    #     next = softmax(repeat_interleave(hier_index)); prev = grouped sums).
    idx_all = jnp.concatenate(idxs, axis=-1)                        # (N, R_SUM)
    exp_out = jnp.dot(idx_all, expand_ref[...],
                      preferred_element_type=f32)                   # (N, 36)
    n1 = _softmax_lastdim(exp_out[:, 0:R2])
    n2 = _softmax_lastdim(exp_out[:, R2:R2 + R3])
    p2 = exp_out[:, R2 + R3:R2 + R3 + R1]
    p3 = exp_out[:, R2 + R3 + R1:R2 + R3 + R1 + R2]

    # --- bag attention (static scopes) + classifier, fused in-kernel
    hier = jnp.concatenate(ys, axis=-1)                             # (N, 3*Dp)
    reprs = []
    for (s0, s1) in x_scope:
        a = att[s0:s1, :]                                           # (bag, 1)
        m = jnp.max(a, axis=0, keepdims=True)
        e = jnp.exp(a - m)
        p = e / jnp.sum(e, axis=0, keepdims=True)                   # softmax over bag
        reprs.append(jnp.sum(p * hier[s0:s1, :], axis=0, keepdims=True))
    x = jnp.concatenate(reprs, axis=0)                              # (bags, 3*Dp)
    # nn.Dropout: identity at inference
    cls = jnp.dot(x, wcls_ref[...], preferred_element_type=f32) + bcls_ref[...]
    cls_pad = jnp.concatenate(
        [cls, jnp.zeros((n - cls.shape[0], cls.shape[1]), f32)], axis=0)

    # --- single lane-dense (N, 128) packed output slab, one unmasked store
    pieces = [logits_all, n1, n2, p2, p3, cls_pad]
    used = sum(p.shape[-1] for p in pieces)
    out_ref[...] = jnp.concatenate(
        pieces + [jnp.zeros((n, dp - used), f32)], axis=-1)


def fused_forward(S_pad, H_all, Wg_all, W1_all, W2_all, small_all, expand_big,
                  w_cls_pad, b_cls):
    """One pallas_call for the whole MyDenseNet + bag_att + classifier forward."""
    args = (S_pad, H_all, Wg_all, W1_all, W2_all, small_all, expand_big,
            w_cls_pad, b_cls)
    n, dp = S_pad.shape
    vmem = functools.partial(pl.BlockSpec, memory_space=pltpu.MemorySpace.VMEM)

    flops = 2 * n * R_PAD * dp                                       # stacked logits
    flops += sum(2 * n * r * dp for r in (R1, R2, R3))               # hier_relation
    flops += 3 * 2 * n * (2 * dp) * dp                               # gates
    flops += 3 * (2 * n * dp * MLP_HIDDEN + 2 * n * MLP_HIDDEN * dp)  # MLPs
    flops += 2 * n * R_SUM * (R2 + R3 + R1 + R2)                     # expand
    flops += 2 * N_BAGS * (3 * dp) * R3                              # classifier
    trans = n * (2 * R_SUM + R2 + R3 + 3 * dp + 4) + N_BAGS * n      # exp/sigmoid/rsqrt
    bytes_acc = sum(int(a.size) * a.dtype.itemsize for a in args) + n * dp * 4

    # TODO(synk): production N_sent -> grid over N, dimension_semantics=("parallel",)
    #             (v7x 2 TCs), constant index_map on weights, N tile >= 256,
    #             pltpu.CompilerParams(vmem_limit_bytes=...) for v7x's 64 MiB VMEM.
    return pl.pallas_call(
        functools.partial(fused_model_kernel, D_TRUE, X_SCOPE),
        out_shape=jax.ShapeDtypeStruct((n, dp), jnp.float32),
        in_specs=[vmem() for _ in args],
        out_specs=vmem(),
        cost_estimate=pl.CostEstimate(flops=int(flops),
                                      transcendentals=int(trans),
                                      bytes_accessed=int(bytes_acc)),
    )(*args)


# ---------------------------------------------------------------------------
# Deterministic parameter init (xavier uniform, zero biases, LN = (1, 0))
# ---------------------------------------------------------------------------
def xavier_uniform(key, out_f, in_f):
    bound = (6.0 / (in_f + out_f)) ** 0.5
    return jax.random.uniform(key, (out_f, in_f), jnp.float32, -bound, bound)


def pad_cols(x, width):
    return jnp.pad(x, ((0, 0), (0, width - x.shape[1])))


def make_hier_layer_params(key, d_true, d_pad, mlp_hidden):
    k1, k2, k3 = jax.random.split(key, 3)
    # hier_rel_gate: nn.Linear(2D, D): y = [S|rel] @ W.T + b ;  W.T is (2D, D)
    wg_t = xavier_uniform(k1, d_true, 2 * d_true).T                    # (2D, D)
    wg = jnp.zeros((2 * d_pad, d_pad), jnp.float32)
    wg = wg.at[:d_true, :d_true].set(wg_t[:d_true])                    # S half
    wg = wg.at[d_pad:d_pad + d_true, :d_true].set(wg_t[d_true:])       # rel half
    w1 = jnp.zeros((d_pad, mlp_hidden), jnp.float32).at[:d_true, :].set(
        xavier_uniform(k2, mlp_hidden, d_true).T)
    w2 = jnp.zeros((mlp_hidden, d_pad), jnp.float32).at[:, :d_true].set(
        xavier_uniform(k3, d_true, mlp_hidden).T)
    bg = jnp.zeros((1, d_pad), jnp.float32)
    gamma = jnp.zeros((1, d_pad), jnp.float32).at[:, :d_true].set(1.0)  # pad lanes 0
    beta = jnp.zeros((1, d_pad), jnp.float32)
    return wg, w1, w2, bg, gamma, beta


def expand_matrix(child_num):
    """One-hot parent->children expand matrix E[i, j] = 1 iff child j of parent i."""
    n_parent = len(child_num)
    n_child = int(sum(child_num))
    m = jnp.zeros((n_parent, n_child), jnp.float32)
    j = 0
    for i, c in enumerate(child_num):
        m = m.at[i, j:j + int(c)].set(1.0)
        j += int(c)
    return m


# ---------------------------------------------------------------------------
# Main
# ---------------------------------------------------------------------------
if __name__ == "__main__":
    key = jax.random.PRNGKey(0)
    ks = jax.random.split(key, 10)

    # synthesized upstream outputs (PCNN sentence features, HierEncoder node feats)
    S_true = jax.random.normal(ks[0], (N_SENT, D_TRUE), jnp.float32)
    h1 = jax.random.normal(ks[1], (R1, D_TRUE), jnp.float32)
    h2 = jax.random.normal(ks[2], (R2, D_TRUE), jnp.float32)
    h3 = jax.random.normal(ks[3], (R3, D_TRUE), jnp.float32)

    S_pad = pad_cols(S_true, D_PAD)
    H_all = jnp.zeros((R_PAD, D_PAD), jnp.float32)
    H_all = H_all.at[0:R1, :D_TRUE].set(h1)
    H_all = H_all.at[R1:R1 + R2, :D_TRUE].set(h2)
    H_all = H_all.at[R1 + R2:R_SUM, :D_TRUE].set(h3)

    # static expand matrices packed block-wise into ONE (28, 36) matrix:
    #   cols 0:8  idx1@e1 (next1 pre-softmax) | cols 8:24 idx2@e2 (next2 pre-softmax)
    #   cols 24:28 idx2@e1^T (prev2)          | cols 28:36 idx3@e2^T (prev3)
    e1 = expand_matrix(HIER1_CHILD_NUM)                    # (R1, R2)
    e2 = expand_matrix(HIER2_CHILD_NUM)                    # (R2, R3)
    expand_big = jnp.zeros((R_SUM, R2 + R3 + R1 + R2), jnp.float32)
    expand_big = expand_big.at[0:R1, 0:R2].set(e1)
    expand_big = expand_big.at[R1:R1 + R2, R2:R2 + R3].set(e2)
    expand_big = expand_big.at[R1:R1 + R2, R2 + R3:R2 + R3 + R1].set(e1.T)
    expand_big = expand_big.at[R1 + R2:R_SUM, R2 + R3 + R1:].set(e2.T)

    # per-layer params stacked on a leading layer axis; bulk weights as bf16
    params = [make_hier_layer_params(k, D_TRUE, D_PAD, MLP_HIDDEN)
              for k in (ks[4], ks[5], ks[6])]
    Wg_all = jnp.stack([p[0] for p in params]).astype(jnp.bfloat16)   # (3, 2Dp, Dp)
    W1_all = jnp.stack([p[1] for p in params]).astype(jnp.bfloat16)   # (3, Dp, H)
    W2_all = jnp.stack([p[2] for p in params]).astype(jnp.bfloat16)   # (3, H, Dp)

    # bag-attention + classifier weights in the padded layout
    w_att = xavier_uniform(ks[7], 1, 3 * D_TRUE)           # (1, 3D), no bias
    w_cls = xavier_uniform(ks[8], R3, 3 * D_TRUE)          # (R3, 3D)
    b_cls = jnp.zeros((1, R3), jnp.float32)
    w_att_blk = jnp.zeros((3, D_PAD), jnp.float32)
    w_cls_pad = jnp.zeros((3 * D_PAD, R3), jnp.float32)
    for l in range(3):
        w_att_blk = w_att_blk.at[l, :D_TRUE].set(
            w_att[0, l * D_TRUE:(l + 1) * D_TRUE])
        w_cls_pad = w_cls_pad.at[l * D_PAD:l * D_PAD + D_TRUE, :].set(
            w_cls[:, l * D_TRUE:(l + 1) * D_TRUE].T)

    # tiny f32 per-layer params packed into one array: rows [bg, gamma, beta, w_att_l]
    small_all = jnp.stack(
        [jnp.concatenate([p[3], p[4], p[5], w_att_blk[l:l + 1]], axis=0)
         for l, p in enumerate(params)], axis=0)           # (3, 4, Dp)

    @jax.jit
    def forward(S_pad, H_all):
        slab = fused_forward(S_pad, H_all, Wg_all, W1_all, W2_all, small_all,
                             expand_big, w_cls_pad, b_cls)
        x = slab[0:N_BAGS, COL_CLS:COL_CLS + R3]
        l1 = slab[:, COL_L1:COL_L1 + R1]
        l2 = slab[:, COL_L2:COL_L2 + R2]
        l3 = slab[:, COL_L3:COL_L3 + R3]
        n1 = slab[:, COL_N1:COL_N1 + R2]
        n2 = slab[:, COL_N2:COL_N2 + R3]
        p2 = slab[:, COL_P2:COL_P2 + R1]
        p3 = slab[:, COL_P3:COL_P3 + R2]
        # same output ordering as MyModel.forward
        return [x, l1, l2, l3, n1, n2, p2, p3]

    res = forward(S_pad, H_all)
    jax.block_until_ready(res)

    x, l1, l2, l3, n1, n2, p2, p3 = res
    assert x.shape == (N_BAGS, R3)
    assert l1.shape == (N_SENT, R1)
    assert l2.shape == (N_SENT, R2)
    assert l3.shape == (N_SENT, R3)
    assert n1.shape == (N_SENT, R2)          # hier1_next_logits
    assert n2.shape == (N_SENT, R3)          # hier2_next_logits
    assert p2.shape == (N_SENT, R1)          # hier2_prev_logits
    assert p3.shape == (N_SENT, R2)          # hier3_prev_logits
    assert all(bool(jnp.all(jnp.isfinite(r))) for r in res)
    # next = softmax rows, prev = grouped softmax sums -> rows sum to ~1
    for probs in (n1, n2, p2, p3):
        assert bool(jnp.allclose(jnp.sum(probs, axis=-1), 1.0, atol=1e-2))

    print("KERNEL_OK")
</pallas_src>

<mosaic_0001>
module attributes {stable_mosaic.version = 11 : i64} {
  func.func @fused_model_kernel(%arg0: memref<8x128xf32, #tpu.memory_space<vmem>>, %arg1: memref<32x128xf32, #tpu.memory_space<vmem>>, %arg2: memref<3x256x128xbf16, #tpu.memory_space<vmem>>, %arg3: memref<3x128x128xbf16, #tpu.memory_space<vmem>>, %arg4: memref<3x128x128xbf16, #tpu.memory_space<vmem>>, %arg5: memref<3x4x128xf32, #tpu.memory_space<vmem>>, %arg6: memref<28x36xf32, #tpu.memory_space<vmem>>, %arg7: memref<384x16xf32, #tpu.memory_space<vmem>>, %arg8: memref<1x16xf32, #tpu.memory_space<vmem>>, %arg9: memref<8x128xf32, #tpu.memory_space<vmem>>) attributes {dimension_semantics = [], scalar_prefetch = 0 : i64, scratch_operands = 0 : i64, tpu.core_type = #tpu.core_type<tc>} {
    %c0 = arith.constant 0 : index
    %c0_0 = arith.constant 0 : index
    %0 = vector.load %arg0[%c0, %c0_0] : memref<8x128xf32, #tpu.memory_space<vmem>>, vector<8x128xf32>
    %1 = tpu.iota {dimensions = array<i32: 1>} : vector<1x128xi32>
    %c96_i32 = arith.constant 96 : i32
    %2 = vector.broadcast %c96_i32 : i32 to vector<1x128xi32>
    %3 = arith.cmpi slt, %1, %2 : vector<1x128xi32>
    %4 = arith.extui %3 : vector<1x128xi1> to vector<1x128xi32>
    %5 = arith.sitofp %4 : vector<1x128xi32> to vector<1x128xf32>
    %c0_1 = arith.constant 0 : index
    %c0_2 = arith.constant 0 : index
    %6 = vector.load %arg1[%c0_1, %c0_2] : memref<32x128xf32, #tpu.memory_space<vmem>>, vector<32x128xf32>
    %7 = arith.truncf %0 : vector<8x128xf32> to vector<8x128xbf16>
    %8 = arith.truncf %6 : vector<32x128xf32> to vector<32x128xbf16>
    %cst = arith.constant dense<0.000000e+00> : vector<8x32xf32>
    %9 = tpu.matmul %7, %8, %cst {dimension_numbers = #tpu.dot_dimension_numbers<[1], [1], [0], [0], [0, 0, 1, 0], [], []>} : vector<8x128xbf16>, vector<32x128xbf16>, vector<8x32xf32> -> vector<8x32xf32>
    %cst_3 = arith.constant 0.000000e+00 : f32
    %10 = vector.broadcast %cst_3 : f32 to vector<8x1xf32>
    %11 = vector.extract_strided_slice %9 {offsets = [0, 0], sizes = [8, 4], strides = [1, 1]} : vector<8x32xf32> to vector<8x4xf32>
    %cst_4 = arith.constant dense<0xFF800000> : vector<8xf32>
    %12 = vector.multi_reduction <maximumf>, %11, %cst_4 [1] : vector<8x4xf32> to vector<8xf32>
    %13 = vector.shape_cast %12 : vector<8xf32> to vector<8x1xf32>
    %14 = vector.broadcast %13 : vector<8x1xf32> to vector<8x4xf32>
    %15 = arith.subf %11, %14 : vector<8x4xf32>
    %16 = math.exp %15 : vector<8x4xf32>
    %cst_5 = arith.constant dense<0.000000e+00> : vector<8xf32>
    %17 = vector.multi_reduction <add>, %16, %cst_5 [1] : vector<8x4xf32> to vector<8xf32>
    %18 = vector.shape_cast %17 : vector<8xf32> to vector<8x1xf32>
    %19 = vector.broadcast %18 : vector<8x1xf32> to vector<8x4xf32>
    %20 = arith.divf %16, %19 : vector<8x4xf32>
    %21 = arith.truncf %20 : vector<8x4xf32> to vector<8x4xbf16>
    %22 = vector.extract_strided_slice %6 {offsets = [0, 0], sizes = [4, 128], strides = [1, 1]} : vector<32x128xf32> to vector<4x128xf32>
    %23 = arith.truncf %22 : vector<4x128xf32> to vector<4x128xbf16>
    %cst_6 = arith.constant dense<0.000000e+00> : vector<8x128xf32>
    %24 = tpu.matmul %21, %23, %cst_6 {dimension_numbers = #tpu.dot_dimension_numbers<[1], [0], [0], [1], [0, 0, 1, 1], [], []>} : vector<8x4xbf16>, vector<4x128xbf16>, vector<8x128xf32> -> vector<8x128xf32>
    %c0_7 = arith.constant 0 : index
    %c0_8 = arith.constant 0 : index
    %c0_9 = arith.constant 0 : index
    %25 = vector.load %arg5[%c0_7, %c0_8, %c0_9] : memref<3x4x128xf32, #tpu.memory_space<vmem>>, vector<1x4x128xf32>
    %26 = vector.shape_cast %25 : vector<1x4x128xf32> to vector<4x128xf32>
    %27 = vector.extract_strided_slice %26 {offsets = [0, 0], sizes = [1, 128], strides = [1, 1]} : vector<4x128xf32> to vector<1x128xf32>
    %28 = vector.extract_strided_slice %26 {offsets = [1, 0], sizes = [1, 128], strides = [1, 1]} : vector<4x128xf32> to vector<1x128xf32>
    %29 = vector.extract_strided_slice %26 {offsets = [2, 0], sizes = [1, 128], strides = [1, 1]} : vector<4x128xf32> to vector<1x128xf32>
    %30 = vector.extract_strided_slice %26 {offsets = [3, 0], sizes = [1, 128], strides = [1, 1]} : vector<4x128xf32> to vector<1x128xf32>
    %31 = tpu.concatenate %0, %24 in 1 : vector<8x128xf32>, vector<8x128xf32> -> vector<8x256xf32>
    %32 = arith.truncf %31 : vector<8x256xf32> to vector<8x256xbf16>
    %c0_10 = arith.constant 0 : index
    %c0_11 = arith.constant 0 : index
    %c0_12 = arith.constant 0 : index
    %33 = vector.load %arg2[%c0_10, %c0_11, %c0_12] : memref<3x256x128xbf16, #tpu.memory_space<vmem>>, vector<1x256x128xbf16>
    %34 = vector.shape_cast %33 : vector<1x256x128xbf16> to vector<256x128xbf16>
    %cst_13 = arith.constant dense<0.000000e+00> : vector<8x128xf32>
    %35 = tpu.matmul %32, %34, %cst_13 {dimension_numbers = #tpu.dot_dimension_numbers<[1], [0], [0], [1], [0, 0, 1, 1], [], []>} : vector<8x256xbf16>, vector<256x128xbf16>, vector<8x128xf32> -> vector<8x128xf32>
    %36 = vector.broadcast %27 : vector<1x128xf32> to vector<8x128xf32>
    %37 = arith.addf %35, %36 : vector<8x128xf32>
    %38 = arith.negf %37 : vector<8x128xf32>
    %39 = math.exp %38 : vector<8x128xf32>
    %cst_14 = arith.constant 1.000000e+00 : f32
    %40 = vector.broadcast %cst_14 : f32 to vector<8x128xf32>
    %41 = arith.addf %40, %39 : vector<8x128xf32>
    %42 = arith.divf %40, %41 : vector<8x128xf32>
    %43 = arith.mulf %42, %0 : vector<8x128xf32>
    %cst_15 = arith.constant 1.000000e+00 : f32
    %44 = vector.broadcast %cst_15 : f32 to vector<8x128xf32>
    %45 = arith.subf %44, %42 : vector<8x128xf32>
    %46 = arith.mulf %45, %24 : vector<8x128xf32>
    %47 = arith.addf %43, %46 : vector<8x128xf32>
    %48 = arith.truncf %47 : vector<8x128xf32> to vector<8x128xbf16>
    %c0_16 = arith.constant 0 : index
    %c0_17 = arith.constant 0 : index
    %c0_18 = arith.constant 0 : index
    %49 = vector.load %arg3[%c0_16, %c0_17, %c0_18] : memref<3x128x128xbf16, #tpu.memory_space<vmem>>, vector<1x128x128xbf16>
    %50 = vector.shape_cast %49 : vector<1x128x128xbf16> to vector<128x128xbf16>
    %cst_19 = arith.constant dense<0.000000e+00> : vector<8x128xf32>
    %51 = tpu.matmul %48, %50, %cst_19 {dimension_numbers = #tpu.dot_dimension_numbers<[1], [0], [0], [1], [0, 0, 1, 1], [], []>} : vector<8x128xbf16>, vector<128x128xbf16>, vector<8x128xf32> -> vector<8x128xf32>
    %cst_20 = arith.constant 0.000000e+00 : f32
    %52 = vector.broadcast %cst_20 : f32 to vector<8x128xf32>
    %53 = arith.maximumf %51, %52 : vector<8x128xf32>
    %54 = arith.truncf %53 : vector<8x128xf32> to vector<8x128xbf16>
    %c0_21 = arith.constant 0 : index
    %c0_22 = arith.constant 0 : index
    %c0_23 = arith.constant 0 : index
    %55 = vector.load %arg4[%c0_21, %c0_22, %c0_23] : memref<3x128x128xbf16, #tpu.memory_space<vmem>>, vector<1x128x128xbf16>
    %56 = vector.shape_cast %55 : vector<1x128x128xbf16> to vector<128x128xbf16>
    %cst_24 = arith.constant dense<0.000000e+00> : vector<8x128xf32>
    %57 = tpu.matmul %54, %56, %cst_24 {dimension_numbers = #tpu.dot_dimension_numbers<[1], [0], [0], [1], [0, 0, 1, 1], [], []>} : vector<8x128xbf16>, vector<128x128xbf16>, vector<8x128xf32> -> vector<8x128xf32>
    %58 = arith.addf %57, %0 : vector<8x128xf32>
    %cst_25 = arith.constant dense<0.000000e+00> : vector<8xf32>
    %59 = vector.multi_reduction <add>, %58, %cst_25 [1] : vector<8x128xf32> to vector<8xf32>
    %60 = vector.shape_cast %59 : vector<8xf32> to vector<8x1xf32>
    %cst_26 = arith.constant 0.010416667 : f32
    %61 = vector.broadcast %cst_26 : f32 to vector<8x1xf32>
    %62 = arith.mulf %60, %61 : vector<8x1xf32>
    %63 = vector.broadcast %62 : vector<8x1xf32> to vector<8x128xf32>
    %64 = arith.subf %58, %63 : vector<8x128xf32>
    %65 = vector.broadcast %5 : vector<1x128xf32> to vector<8x128xf32>
    %66 = arith.mulf %64, %65 : vector<8x128xf32>
    %67 = arith.mulf %66, %66 : vector<8x128xf32>
    %cst_27 = arith.constant dense<0.000000e+00> : vector<8xf32>
    %68 = vector.multi_reduction <add>, %67, %cst_27 [1] : vector<8x128xf32> to vector<8xf32>
    %69 = vector.shape_cast %68 : vector<8xf32> to vector<8x1xf32>
    %cst_28 = arith.constant 0.010416667 : f32
    %70 = vector.broadcast %cst_28 : f32 to vector<8x1xf32>
    %71 = arith.mulf %69, %70 : vector<8x1xf32>
    %cst_29 = arith.constant 9.99999974E-6 : f32
    %72 = vector.broadcast %cst_29 : f32 to vector<8x1xf32>
    %73 = arith.addf %71, %72 : vector<8x1xf32>
    %74 = math.rsqrt %73 : vector<8x1xf32>
    %75 = vector.broadcast %74 : vector<8x1xf32> to vector<8x128xf32>
    %76 = arith.mulf %64, %75 : vector<8x128xf32>
    %77 = vector.broadcast %28 : vector<1x128xf32> to vector<8x128xf32>
    %78 = arith.mulf %76, %77 : vector<8x128xf32>
    %79 = vector.broadcast %29 : vector<1x128xf32> to vector<8x128xf32>
    %80 = arith.addf %78, %79 : vector<8x128xf32>
    %81 = vector.broadcast %30 : vector<1x128xf32> to vector<8x128xf32>
    %82 = arith.mulf %80, %81 : vector<8x128xf32>
    %cst_30 = arith.constant dense<0.000000e+00> : vector<8xf32>
    %83 = vector.multi_reduction <add>, %82, %cst_30 [1] : vector<8x128xf32> to vector<8xf32>
    %84 = vector.shape_cast %83 : vector<8xf32> to vector<8x1xf32>
    %85 = arith.addf %10, %84 : vector<8x1xf32>
    %86 = vector.extract_strided_slice %9 {offsets = [0, 4], sizes = [8, 8], strides = [1, 1]} : vector<8x32xf32> to vector<8x8xf32>
    %cst_31 = arith.constant dense<0xFF800000> : vector<8xf32>
    %87 = vector.multi_reduction <maximumf>, %86, %cst_31 [1] : vector<8x8xf32> to vector<8xf32>
    %88 = vector.shape_cast %87 : vector<8xf32> to vector<8x1xf32>
    %89 = vector.broadcast %88 : vector<8x1xf32> to vector<8x8xf32>
    %90 = arith.subf %86, %89 : vector<8x8xf32>
    %91 = math.exp %90 : vector<8x8xf32>
    %cst_32 = arith.constant dense<0.000000e+00> : vector<8xf32>
    %92 = vector.multi_reduction <add>, %91, %cst_32 [1] : vector<8x8xf32> to vector<8xf32>
    %93 = vector.shape_cast %92 : vector<8xf32> to vector<8x1xf32>
    %94 = vector.broadcast %93 : vector<8x1xf32> to vector<8x8xf32>
    %95 = arith.divf %91, %94 : vector<8x8xf32>
    %96 = arith.truncf %95 : vector<8x8xf32> to vector<8x8xbf16>
    %97 = vector.extract_strided_slice %6 {offsets = [4, 0], sizes = [8, 128], strides = [1, 1]} : vector<32x128xf32> to vector<8x128xf32>
    %98 = arith.truncf %97 : vector<8x128xf32> to vector<8x128xbf16>
    %cst_33 = arith.constant dense<0.000000e+00> : vector<8x128xf32>
    %99 = tpu.matmul %96, %98, %cst_33 {dimension_numbers = #tpu.dot_dimension_numbers<[1], [0], [0], [1], [0, 0, 1, 1], [], []>} : vector<8x8xbf16>, vector<8x128xbf16>, vector<8x128xf32> -> vector<8x128xf32>
    %c1 = arith.constant 1 : index
    %c0_34 = arith.constant 0 : index
    %c0_35 = arith.constant 0 : index
    %100 = vector.load %arg5[%c1, %c0_34, %c0_35] : memref<3x4x128xf32, #tpu.memory_space<vmem>>, vector<1x4x128xf32>
    %101 = vector.shape_cast %100 : vector<1x4x128xf32> to vector<4x128xf32>
    %102 = vector.extract_strided_slice %101 {offsets = [0, 0], sizes = [1, 128], strides = [1, 1]} : vector<4x128xf32> to vector<1x128xf32>
    %103 = vector.extract_strided_slice %101 {offsets = [1, 0], sizes = [1, 128], strides = [1, 1]} : vector<4x128xf32> to vector<1x128xf32>
    %104 = vector.extract_strided_slice %101 {offsets = [2, 0], sizes = [1, 128], strides = [1, 1]} : vector<4x128xf32> to vector<1x128xf32>
    %105 = vector.extract_strided_slice %101 {offsets = [3, 0], sizes = [1, 128], strides = [1, 1]} : vector<4x128xf32> to vector<1x128xf32>
    %106 = tpu.concatenate %0, %99 in 1 : vector<8x128xf32>, vector<8x128xf32> -> vector<8x256xf32>
    %107 = arith.truncf %106 : vector<8x256xf32> to vector<8x256xbf16>
    %c1_36 = arith.constant 1 : index
    %c0_37 = arith.constant 0 : index
    %c0_38 = arith.constant 0 : index
    %108 = vector.load %arg2[%c1_36, %c0_37, %c0_38] : memref<3x256x128xbf16, #tpu.memory_space<vmem>>, vector<1x256x128xbf16>
    %109 = vector.shape_cast %108 : vector<1x256x128xbf16> to vector<256x128xbf16>
    %cst_39 = arith.constant dense<0.000000e+00> : vector<8x128xf32>
    %110 = tpu.matmul %107, %109, %cst_39 {dimension_numbers = #tpu.dot_dimension_numbers<[1], [0], [0], [1], [0, 0, 1, 1], [], []>} : vector<8x256xbf16>, vector<256x128xbf16>, vector<8x128xf32> -> vector<8x128xf32>
    %111 = vector.broadcast %102 : vector<1x128xf32> to vector<8x128xf32>
    %112 = arith.addf %110, %111 : vector<8x128xf32>
    %113 = arith.negf %112 : vector<8x128xf32>
    %114 = math.exp %113 : vector<8x128xf32>
    %cst_40 = arith.constant 1.000000e+00 : f32
    %115 = vector.broadcast %cst_40 : f32 to vector<8x128xf32>
    %116 = arith.addf %115, %114 : vector<8x128xf32>
    %117 = arith.divf %115, %116 : vector<8x128xf32>
    %118 = arith.mulf %117, %0 : vector<8x128xf32>
    %cst_41 = arith.constant 1.000000e+00 : f32
    %119 = vector.broadcast %cst_41 : f32 to vector<8x128xf32>
    %120 = arith.subf %119, %117 : vector<8x128xf32>
    %121 = arith.mulf %120, %99 : vector<8x128xf32>
    %122 = arith.addf %118, %121 : vector<8x128xf32>
    %123 = arith.truncf %122 : vector<8x128xf32> to vector<8x128xbf16>
    %c1_42 = arith.constant 1 : index
    %c0_43 = arith.constant 0 : index
    %c0_44 = arith.constant 0 : index
    %124 = vector.load %arg3[%c1_42, %c0_43, %c0_44] : memref<3x128x128xbf16, #tpu.memory_space<vmem>>, vector<1x128x128xbf16>
    %125 = vector.shape_cast %124 : vector<1x128x128xbf16> to vector<128x128xbf16>
    %cst_45 = arith.constant dense<0.000000e+00> : vector<8x128xf32>
    %126 = tpu.matmul %123, %125, %cst_45 {dimension_numbers = #tpu.dot_dimension_numbers<[1], [0], [0], [1], [0, 0, 1, 1], [], []>} : vector<8x128xbf16>, vector<128x128xbf16>, vector<8x128xf32> -> vector<8x128xf32>
    %cst_46 = arith.constant 0.000000e+00 : f32
    %127 = vector.broadcast %cst_46 : f32 to vector<8x128xf32>
    %128 = arith.maximumf %126, %127 : vector<8x128xf32>
    %129 = arith.truncf %128 : vector<8x128xf32> to vector<8x128xbf16>
    %c1_47 = arith.constant 1 : index
    %c0_48 = arith.constant 0 : index
    %c0_49 = arith.constant 0 : index
    %130 = vector.load %arg4[%c1_47, %c0_48, %c0_49] : memref<3x128x128xbf16, #tpu.memory_space<vmem>>, vector<1x128x128xbf16>
    %131 = vector.shape_cast %130 : vector<1x128x128xbf16> to vector<128x128xbf16>
    %cst_50 = arith.constant dense<0.000000e+00> : vector<8x128xf32>
    %132 = tpu.matmul %129, %131, %cst_50 {dimension_numbers = #tpu.dot_dimension_numbers<[1], [0], [0], [1], [0, 0, 1, 1], [], []>} : vector<8x128xbf16>, vector<128x128xbf16>, vector<8x128xf32> -> vector<8x128xf32>
    %133 = arith.addf %132, %0 : vector<8x128xf32>
    %cst_51 = arith.constant dense<0.000000e+00> : vector<8xf32>
    %134 = vector.multi_reduction <add>, %133, %cst_51 [1] : vector<8x128xf32> to vector<8xf32>
    %135 = vector.shape_cast %134 : vector<8xf32> to vector<8x1xf32>
    %cst_52 = arith.constant 0.010416667 : f32
    %136 = vector.broadcast %cst_52 : f32 to vector<8x1xf32>
    %137 = arith.mulf %135, %136 : vector<8x1xf32>
    %138 = vector.broadcast %137 : vector<8x1xf32> to vector<8x128xf32>
    %139 = arith.subf %133, %138 : vector<8x128xf32>
    %140 = vector.broadcast %5 : vector<1x128xf32> to vector<8x128xf32>
    %141 = arith.mulf %139, %140 : vector<8x128xf32>
    %142 = arith.mulf %141, %141 : vector<8x128xf32>
    %cst_53 = arith.constant dense<0.000000e+00> : vector<8xf32>
    %143 = vector.multi_reduction <add>, %142, %cst_53 [1] : vector<8x128xf32> to vector<8xf32>
    %144 = vector.shape_cast %143 : vector<8xf32> to vector<8x1xf32>
    %cst_54 = arith.constant 0.010416667 : f32
    %145 = vector.broadcast %cst_54 : f32 to vector<8x1xf32>
    %146 = arith.mulf %144, %145 : vector<8x1xf32>
    %cst_55 = arith.constant 9.99999974E-6 : f32
    %147 = vector.broadcast %cst_55 : f32 to vector<8x1xf32>
    %148 = arith.addf %146, %147 : vector<8x1xf32>
    %149 = math.rsqrt %148 : vector<8x1xf32>
    %150 = vector.broadcast %149 : vector<8x1xf32> to vector<8x128xf32>
    %151 = arith.mulf %139, %150 : vector<8x128xf32>
    %152 = vector.broadcast %103 : vector<1x128xf32> to vector<8x128xf32>
    %153 = arith.mulf %151, %152 : vector<8x128xf32>
    %154 = vector.broadcast %104 : vector<1x128xf32> to vector<8x128xf32>
    %155 = arith.addf %153, %154 : vector<8x128xf32>
    %156 = vector.broadcast %105 : vector<1x128xf32> to vector<8x128xf32>
    %157 = arith.mulf %155, %156 : vector<8x128xf32>
    %cst_56 = arith.constant dense<0.000000e+00> : vector<8xf32>
    %158 = vector.multi_reduction <add>, %157, %cst_56 [1] : vector<8x128xf32> to vector<8xf32>
    %159 = vector.shape_cast %158 : vector<8xf32> to vector<8x1xf32>
    %160 = arith.addf %85, %159 : vector<8x1xf32>
    %161 = vector.extract_strided_slice %9 {offsets = [0, 12], sizes = [8, 16], strides = [1, 1]} : vector<8x32xf32> to vector<8x16xf32>
    %cst_57 = arith.constant dense<0xFF800000> : vector<8xf32>
    %162 = vector.multi_reduction <maximumf>, %161, %cst_57 [1] : vector<8x16xf32> to vector<8xf32>
    %163 = vector.shape_cast %162 : vector<8xf32> to vector<8x1xf32>
    %164 = vector.broadcast %163 : vector<8x1xf32> to vector<8x16xf32>
    %165 = arith.subf %161, %164 : vector<8x16xf32>
    %166 = math.exp %165 : vector<8x16xf32>
    %cst_58 = arith.constant dense<0.000000e+00> : vector<8xf32>
    %167 = vector.multi_reduction <add>, %166, %cst_58 [1] : vector<8x16xf32> to vector<8xf32>
    %168 = vector.shape_cast %167 : vector<8xf32> to vector<8x1xf32>
    %169 = vector.broadcast %168 : vector<8x1xf32> to vector<8x16xf32>
    %170 = arith.divf %166, %169 : vector<8x16xf32>
    %171 = arith.truncf %170 : vector<8x16xf32> to vector<8x16xbf16>
    %172 = vector.extract_strided_slice %6 {offsets = [12, 0], sizes = [16, 128], strides = [1, 1]} : vector<32x128xf32> to vector<16x128xf32>
    %173 = arith.truncf %172 : vector<16x128xf32> to vector<16x128xbf16>
    %cst_59 = arith.constant dense<0.000000e+00> : vector<8x128xf32>
    %174 = tpu.matmul %171, %173, %cst_59 {dimension_numbers = #tpu.dot_dimension_numbers<[1], [0], [0], [1], [0, 0, 1, 1], [], []>} : vector<8x16xbf16>, vector<16x128xbf16>, vector<8x128xf32> -> vector<8x128xf32>
    %c2 = arith.constant 2 : index
    %c0_60 = arith.constant 0 : index
    %c0_61 = arith.constant 0 : index
    %175 = vector.load %arg5[%c2, %c0_60, %c0_61] : memref<3x4x128xf32, #tpu.memory_space<vmem>>, vector<1x4x128xf32>
    %176 = vector.shape_cast %175 : vector<1x4x128xf32> to vector<4x128xf32>
    %177 = vector.extract_strided_slice %176 {offsets = [0, 0], sizes = [1, 128], strides = [1, 1]} : vector<4x128xf32> to vector<1x128xf32>
    %178 = vector.extract_strided_slice %176 {offsets = [1, 0], sizes = [1, 128], strides = [1, 1]} : vector<4x128xf32> to vector<1x128xf32>
    %179 = vector.extract_strided_slice %176 {offsets = [2, 0], sizes = [1, 128], strides = [1, 1]} : vector<4x128xf32> to vector<1x128xf32>
    %180 = vector.extract_strided_slice %176 {offsets = [3, 0], sizes = [1, 128], strides = [1, 1]} : vector<4x128xf32> to vector<1x128xf32>
    %181 = tpu.concatenate %0, %174 in 1 : vector<8x128xf32>, vector<8x128xf32> -> vector<8x256xf32>
    %182 = arith.truncf %181 : vector<8x256xf32> to vector<8x256xbf16>
    %c2_62 = arith.constant 2 : index
    %c0_63 = arith.constant 0 : index
    %c0_64 = arith.constant 0 : index
    %183 = vector.load %arg2[%c2_62, %c0_63, %c0_64] : memref<3x256x128xbf16, #tpu.memory_space<vmem>>, vector<1x256x128xbf16>
    %184 = vector.shape_cast %183 : vector<1x256x128xbf16> to vector<256x128xbf16>
    %cst_65 = arith.constant dense<0.000000e+00> : vector<8x128xf32>
    %185 = tpu.matmul %182, %184, %cst_65 {dimension_numbers = #tpu.dot_dimension_numbers<[1], [0], [0], [1], [0, 0, 1, 1], [], []>} : vector<8x256xbf16>, vector<256x128xbf16>, vector<8x128xf32> -> vector<8x128xf32>
    %186 = vector.broadcast %177 : vector<1x128xf32> to vector<8x128xf32>
    %187 = arith.addf %185, %186 : vector<8x128xf32>
    %188 = arith.negf %187 : vector<8x128xf32>
    %189 = math.exp %188 : vector<8x128xf32>
    %cst_66 = arith.constant 1.000000e+00 : f32
    %190 = vector.broadcast %cst_66 : f32 to vector<8x128xf32>
    %191 = arith.addf %190, %189 : vector<8x128xf32>
    %192 = arith.divf %190, %191 : vector<8x128xf32>
    %193 = arith.mulf %192, %0 : vector<8x128xf32>
    %cst_67 = arith.constant 1.000000e+00 : f32
    %194 = vector.broadcast %cst_67 : f32 to vector<8x128xf32>
    %195 = arith.subf %194, %192 : vector<8x128xf32>
    %196 = arith.mulf %195, %174 : vector<8x128xf32>
    %197 = arith.addf %193, %196 : vector<8x128xf32>
    %198 = arith.truncf %197 : vector<8x128xf32> to vector<8x128xbf16>
    %c2_68 = arith.constant 2 : index
    %c0_69 = arith.constant 0 : index
    %c0_70 = arith.constant 0 : index
    %199 = vector.load %arg3[%c2_68, %c0_69, %c0_70] : memref<3x128x128xbf16, #tpu.memory_space<vmem>>, vector<1x128x128xbf16>
    %200 = vector.shape_cast %199 : vector<1x128x128xbf16> to vector<128x128xbf16>
    %cst_71 = arith.constant dense<0.000000e+00> : vector<8x128xf32>
    %201 = tpu.matmul %198, %200, %cst_71 {dimension_numbers = #tpu.dot_dimension_numbers<[1], [0], [0], [1], [0, 0, 1, 1], [], []>} : vector<8x128xbf16>, vector<128x128xbf16>, vector<8x128xf32> -> vector<8x128xf32>
    %cst_72 = arith.constant 0.000000e+00 : f32
    %202 = vector.broadcast %cst_72 : f32 to vector<8x128xf32>
    %203 = arith.maximumf %201, %202 : vector<8x128xf32>
    %204 = arith.truncf %203 : vector<8x128xf32> to vector<8x128xbf16>
    %c2_73 = arith.constant 2 : index
    %c0_74 = arith.constant 0 : index
    %c0_75 = arith.constant 0 : index
    %205 = vector.load %arg4[%c2_73, %c0_74, %c0_75] : memref<3x128x128xbf16, #tpu.memory_space<vmem>>, vector<1x128x128xbf16>
    %206 = vector.shape_cast %205 : vector<1x128x128xbf16> to vector<128x128xbf16>
    %cst_76 = arith.constant dense<0.000000e+00> : vector<8x128xf32>
    %207 = tpu.matmul %204, %206, %cst_76 {dimension_numbers = #tpu.dot_dimension_numbers<[1], [0], [0], [1], [0, 0, 1, 1], [], []>} : vector<8x128xbf16>, vector<128x128xbf16>, vector<8x128xf32> -> vector<8x128xf32>
    %208 = arith.addf %207, %0 : vector<8x128xf32>
    %cst_77 = arith.constant dense<0.000000e+00> : vector<8xf32>
    %209 = vector.multi_reduction <add>, %208, %cst_77 [1] : vector<8x128xf32> to vector<8xf32>
    %210 = vector.shape_cast %209 : vector<8xf32> to vector<8x1xf32>
    %cst_78 = arith.constant 0.010416667 : f32
    %211 = vector.broadcast %cst_78 : f32 to vector<8x1xf32>
    %212 = arith.mulf %210, %211 : vector<8x1xf32>
    %213 = vector.broadcast %212 : vector<8x1xf32> to vector<8x128xf32>
    %214 = arith.subf %208, %213 : vector<8x128xf32>
    %215 = vector.broadcast %5 : vector<1x128xf32> to vector<8x128xf32>
    %216 = arith.mulf %214, %215 : vector<8x128xf32>
    %217 = arith.mulf %216, %216 : vector<8x128xf32>
    %cst_79 = arith.constant dense<0.000000e+00> : vector<8xf32>
    %218 = vector.multi_reduction <add>, %217, %cst_79 [1] : vector<8x128xf32> to vector<8xf32>
    %219 = vector.shape_cast %218 : vector<8xf32> to vector<8x1xf32>
    %cst_80 = arith.constant 0.010416667 : f32
    %220 = vector.broadcast %cst_80 : f32 to vector<8x1xf32>
    %221 = arith.mulf %219, %220 : vector<8x1xf32>
    %cst_81 = arith.constant 9.99999974E-6 : f32
    %222 = vector.broadcast %cst_81 : f32 to vector<8x1xf32>
    %223 = arith.addf %221, %222 : vector<8x1xf32>
    %224 = math.rsqrt %223 : vector<8x1xf32>
    %225 = vector.broadcast %224 : vector<8x1xf32> to vector<8x128xf32>
    %226 = arith.mulf %214, %225 : vector<8x128xf32>
    %227 = vector.broadcast %178 : vector<1x128xf32> to vector<8x128xf32>
    %228 = arith.mulf %226, %227 : vector<8x128xf32>
    %229 = vector.broadcast %179 : vector<1x128xf32> to vector<8x128xf32>
    %230 = arith.addf %228, %229 : vector<8x128xf32>
    %231 = vector.broadcast %180 : vector<1x128xf32> to vector<8x128xf32>
    %232 = arith.mulf %230, %231 : vector<8x128xf32>
    %cst_82 = arith.constant dense<0.000000e+00> : vector<8xf32>
    %233 = vector.multi_reduction <add>, %232, %cst_82 [1] : vector<8x128xf32> to vector<8xf32>
    %234 = vector.shape_cast %233 : vector<8xf32> to vector<8x1xf32>
    %235 = arith.addf %160, %234 : vector<8x1xf32>
    %236 = tpu.concatenate %20, %95, %170 in 1 : vector<8x4xf32>, vector<8x8xf32>, vector<8x16xf32> -> vector<8x28xf32>
    %c0_83 = arith.constant 0 : index
    %c0_84 = arith.constant 0 : index
    %237 = vector.load %arg6[%c0_83, %c0_84] : memref<28x36xf32, #tpu.memory_space<vmem>>, vector<28x36xf32>
    %cst_85 = arith.constant dense<0.000000e+00> : vector<8x36xf32>
    %238 = tpu.matmul %236, %237, %cst_85 {dimension_numbers = #tpu.dot_dimension_numbers<[1], [0], [0], [1], [0, 0, 1, 1], [], []>} : vector<8x28xf32>, vector<28x36xf32>, vector<8x36xf32> -> vector<8x36xf32>
    %239 = vector.extract_strided_slice %238 {offsets = [0, 0], sizes = [8, 8], strides = [1, 1]} : vector<8x36xf32> to vector<8x8xf32>
    %cst_86 = arith.constant dense<0xFF800000> : vector<8xf32>
    %240 = vector.multi_reduction <maximumf>, %239, %cst_86 [1] : vector<8x8xf32> to vector<8xf32>
    %241 = vector.shape_cast %240 : vector<8xf32> to vector<8x1xf32>
    %242 = vector.broadcast %241 : vector<8x1xf32> to vector<8x8xf32>
    %243 = arith.subf %239, %242 : vector<8x8xf32>
    %244 = math.exp %243 : vector<8x8xf32>
    %cst_87 = arith.constant dense<0.000000e+00> : vector<8xf32>
    %245 = vector.multi_reduction <add>, %244, %cst_87 [1] : vector<8x8xf32> to vector<8xf32>
    %246 = vector.shape_cast %245 : vector<8xf32> to vector<8x1xf32>
    %247 = vector.broadcast %246 : vector<8x1xf32> to vector<8x8xf32>
    %248 = arith.divf %244, %247 : vector<8x8xf32>
    %249 = vector.extract_strided_slice %238 {offsets = [0, 8], sizes = [8, 16], strides = [1, 1]} : vector<8x36xf32> to vector<8x16xf32>
    %cst_88 = arith.constant dense<0xFF800000> : vector<8xf32>
    %250 = vector.multi_reduction <maximumf>, %249, %cst_88 [1] : vector<8x16xf32> to vector<8xf32>
    %251 = vector.shape_cast %250 : vector<8xf32> to vector<8x1xf32>
    %252 = vector.broadcast %251 : vector<8x1xf32> to vector<8x16xf32>
    %253 = arith.subf %249, %252 : vector<8x16xf32>
    %254 = math.exp %253 : vector<8x16xf32>
    %cst_89 = arith.constant dense<0.000000e+00> : vector<8xf32>
    %255 = vector.multi_reduction <add>, %254, %cst_89 [1] : vector<8x16xf32> to vector<8xf32>
    %256 = vector.shape_cast %255 : vector<8xf32> to vector<8x1xf32>
    %257 = vector.broadcast %256 : vector<8x1xf32> to vector<8x16xf32>
    %258 = arith.divf %254, %257 : vector<8x16xf32>
    %259 = vector.extract_strided_slice %238 {offsets = [0, 24], sizes = [8, 4], strides = [1, 1]} : vector<8x36xf32> to vector<8x4xf32>
    %260 = vector.extract_strided_slice %238 {offsets = [0, 28], sizes = [8, 8], strides = [1, 1]} : vector<8x36xf32> to vector<8x8xf32>
    %261 = tpu.concatenate %80, %155, %230 in 1 : vector<8x128xf32>, vector<8x128xf32>, vector<8x128xf32> -> vector<8x384xf32>
    %262 = vector.extract_strided_slice %235 {offsets = [0, 0], sizes = [4, 1], strides = [1, 1]} : vector<8x1xf32> to vector<4x1xf32>
    %cst_90 = arith.constant dense<0xFF800000> : vector<1xf32>
    %263 = vector.multi_reduction <maximumf>, %262, %cst_90 [0] : vector<4x1xf32> to vector<1xf32>
    %264 = vector.shape_cast %263 : vector<1xf32> to vector<1x1xf32>
    %265 = vector.broadcast %264 : vector<1x1xf32> to vector<4x1xf32>
    %266 = arith.subf %262, %265 : vector<4x1xf32>
    %267 = math.exp %266 : vector<4x1xf32>
    %cst_91 = arith.constant dense<0.000000e+00> : vector<1xf32>
    %268 = vector.multi_reduction <add>, %267, %cst_91 [0] : vector<4x1xf32> to vector<1xf32>
    %269 = vector.shape_cast %268 : vector<1xf32> to vector<1x1xf32>
    %270 = vector.broadcast %269 : vector<1x1xf32> to vector<4x1xf32>
    %271 = arith.divf %267, %270 : vector<4x1xf32>
    %272 = vector.extract_strided_slice %261 {offsets = [0, 0], sizes = [4, 384], strides = [1, 1]} : vector<8x384xf32> to vector<4x384xf32>
    %273 = vector.broadcast %271 : vector<4x1xf32> to vector<4x384xf32>
    %274 = arith.mulf %273, %272 : vector<4x384xf32>
    %cst_92 = arith.constant dense<0.000000e+00> : vector<384xf32>
    %275 = vector.multi_reduction <add>, %274, %cst_92 [0] : vector<4x384xf32> to vector<384xf32>
    %276 = vector.shape_cast %275 : vector<384xf32> to vector<1x384xf32>
    %277 = vector.extract_strided_slice %235 {offsets = [4, 0], sizes = [4, 1], strides = [1, 1]} : vector<8x1xf32> to vector<4x1xf32>
    %cst_93 = arith.constant dense<0xFF800000> : vector<1xf32>
    %278 = vector.multi_reduction <maximumf>, %277, %cst_93 [0] : vector<4x1xf32> to vector<1xf32>
    %279 = vector.shape_cast %278 : vector<1xf32> to vector<1x1xf32>
    %280 = vector.broadcast %279 : vector<1x1xf32> to vector<4x1xf32>
    %281 = arith.subf %277, %280 : vector<4x1xf32>
    %282 = math.exp %281 : vector<4x1xf32>
    %cst_94 = arith.constant dense<0.000000e+00> : vector<1xf32>
    %283 = vector.multi_reduction <add>, %282, %cst_94 [0] : vector<4x1xf32> to vector<1xf32>
    %284 = vector.shape_cast %283 : vector<1xf32> to vector<1x1xf32>
    %285 = vector.broadcast %284 : vector<1x1xf32> to vector<4x1xf32>
    %286 = arith.divf %282, %285 : vector<4x1xf32>
    %287 = vector.extract_strided_slice %261 {offsets = [4, 0], sizes = [4, 384], strides = [1, 1]} : vector<8x384xf32> to vector<4x384xf32>
    %288 = vector.broadcast %286 : vector<4x1xf32> to vector<4x384xf32>
    %289 = arith.mulf %288, %287 : vector<4x384xf32>
    %cst_95 = arith.constant dense<0.000000e+00> : vector<384xf32>
    %290 = vector.multi_reduction <add>, %289, %cst_95 [0] : vector<4x384xf32> to vector<384xf32>
    %291 = vector.shape_cast %290 : vector<384xf32> to vector<1x384xf32>
    %292 = tpu.concatenate %276, %291 in 0 : vector<1x384xf32>, vector<1x384xf32> -> vector<2x384xf32>
    %c0_96 = arith.constant 0 : index
    %c0_97 = arith.constant 0 : index
    %293 = vector.load %arg7[%c0_96, %c0_97] : memref<384x16xf32, #tpu.memory_space<vmem>>, vector<384x16xf32>
    %cst_98 = arith.constant dense<0.000000e+00> : vector<2x16xf32>
    %294 = tpu.matmul %292, %293, %cst_98 {dimension_numbers = #tpu.dot_dimension_numbers<[1], [0], [0], [1], [0, 0, 1, 1], [], []>} : vector<2x384xf32>, vector<384x16xf32>, vector<2x16xf32> -> vector<2x16xf32>
    %c0_99 = arith.constant 0 : index
    %c0_100 = arith.constant 0 : index
    %295 = vector.load %arg8[%c0_99, %c0_100] : memref<1x16xf32, #tpu.memory_space<vmem>>, vector<1x16xf32>
    %296 = vector.broadcast %295 : vector<1x16xf32> to vector<2x16xf32>
    %297 = arith.addf %294, %296 : vector<2x16xf32>
    %cst_101 = arith.constant 0.000000e+00 : f32
    %298 = vector.broadcast %cst_101 : f32 to vector<6x16xf32>
    %299 = tpu.concatenate %297, %298 in 0 : vector<2x16xf32>, vector<6x16xf32> -> vector<8x16xf32>
    %cst_102 = arith.constant 0.000000e+00 : f32
    %300 = vector.broadcast %cst_102 : f32 to vector<8x44xf32>
    %301 = tpu.concatenate %9, %248, %258, %259, %260, %299, %300 in 1 : vector<8x32xf32>, vector<8x8xf32>, vector<8x16xf32>, vector<8x4xf32>, vector<8x8xf32>, vector<8x16xf32>, vector<8x44xf32> -> vector<8x128xf32>
    %c0_103 = arith.constant 0 : index
    %c0_104 = arith.constant 0 : index
    %302 = vector.load %arg9[%c0_103, %c0_104] : memref<8x128xf32, #tpu.memory_space<vmem>>, vector<8x128xf32>
    tpu.vector_store %arg9[%c0_103, %c0_104], %301 {strides = array<i32>} : memref<8x128xf32, #tpu.memory_space<vmem>>, vector<8x128xf32>,
    return
  }
}

</mosaic_0001>

<llo_original>
// kernel: forward.1
$region0: #{forward.1}
  #allocation0 [shape = 'u32[]', space=smem, size = 0x4, offset = 0x4, fixed_abs, tag = 'smem constant byte address 0x4 - core index']
  #allocation1 [shape = 'u32[144,128]{1,0:T(1,128)}', space=vmem, size = 0x12000, scoped, tag = 'internal scratch']
  %s0 = inlined_call_operand.vmem [shape: f32[8,128], index: 0, kind: input, shape index: {}]
  %s1 = inlined_call_operand.hbm [shape: f32[32,128], index: 1, kind: input, shape index: {}]
  %s2 = inlined_call_operand.hbm [shape: bf16[3,256,128], index: 2, kind: input, shape index: {}]
  %s3 = inlined_call_operand.hbm [shape: bf16[3,128,128], index: 3, kind: input, shape index: {}]
  %s4 = inlined_call_operand.hbm [shape: bf16[3,128,128], index: 4, kind: input, shape index: {}]
  %s5 = inlined_call_operand.vmem [shape: f32[3,4,128], index: 5, kind: input, shape index: {}]
  %s6 = inlined_call_operand.hbm [shape: f32[28,36], index: 6, kind: input, shape index: {}]
  %s7 = inlined_call_operand.hbm [shape: f32[384,16], index: 7, kind: input, shape index: {}]
  %s8 = inlined_call_operand.vmem [shape: f32[1,16], index: 8, kind: input, shape index: {}]
  %s9 = inlined_call_operand.vmem [shape: f32[8,128], index: 9, kind: output, shape index: {}]
  %s10 = sld [smem:[#allocation0]]
  $region70: #{forward.1} parent=0
    _
  %s12 = ssub.s32 1, %s10
  %s13 = scalar_select 0, %s12, %s10
  $region1: #{forward.1} parent=0
    #allocation2 [shape = 'u8[16384]{0}', space=vmem, size = 0x4000, scoped, tag = 'input window, operand 1, single buffered']
    #allocation3 [shape = 's32[1]{0}', space=sflag, size = 0x4, scoped, tag = 'scoped memory for forward.1']
    #allocation4 [shape = 'u8[196608]{0}', space=vmem, size = 0x30000, scoped, tag = 'input window, operand 2, single buffered']
    #allocation5 [shape = 's32[1]{0}', space=sflag, size = 0x4, scoped, tag = 'scoped memory for forward.1']
    #allocation6 [shape = 'u8[98304]{0}', space=vmem, size = 0x18000, scoped, tag = 'input window, operand 3, single buffered']
    #allocation7 [shape = 'u8[98304]{0}', space=vmem, size = 0x18000, scoped, tag = 'input window, operand 4, single buffered']
    #allocation8 [shape = 's32[1]{0}', space=sflag, size = 0x4, scoped, tag = 'scoped memory for forward.1']
    #allocation9 [shape = 'u8[16384]{0}', space=vmem, size = 0x4000, scoped, tag = 'input window, operand 6, single buffered']
    #allocation10 [shape = 'u8[196608]{0}', space=vmem, size = 0x30000, scoped, tag = 'input window, operand 7, single buffered']
    #allocation11 [shape = 's32[1]{0}', space=sflag, size = 0x4, scoped, tag = 'scoped memory for forward.1']
    %14 = vsyncpa [#allocation3], 0
    %15 = vsyncpa [#allocation5], 0
    %16 = vsyncpa [#allocation8], 0
    %17 = vsyncpa [#allocation11], 0
    // Predicated region
    $region2: #{forward.1} parent=1 // pred_check
      _
    $region3: #{forward.1} parent=1 // pred_check_branch
      %19 = sbr.rel (0) target = $region5
    $region4: #{forward.1} parent=1 // pred_region
      _
    $region5: #{forward.1} parent=1 // pred_fallthru
      _
    // Predicated region
    $region6: #{forward.1} parent=1 // pred_check
      _
    $region7: #{forward.1} parent=1 // pred_check_branch
      %21 = sbr.rel (0) target = $region9
    $region8: #{forward.1} parent=1 // pred_region
      %s23 = ssub.s32 512, 512
      %24 = vsyncadd [#allocation3], %s23
      %s25 = sshll.u32 [#allocation2], 4
      %s26 = int_to_ptr.vmem [resolvable:$true] %s25
      %31 = dma.hbm_to_vmem [thread:$0]  %s1, 512, %s26, [#allocation3], 128, 128, 8
    $region9: #{forward.1} parent=1 // pred_fallthru
      _
    // Predicated region
    $region10: #{forward.1} parent=1 // pred_check
      _
    $region11: #{forward.1} parent=1 // pred_check_branch
      %33 = sbr.rel (0) target = $region13
    $region12: #{forward.1} parent=1 // pred_region
      %s35 = ssub.s32 6144, 6144
      %36 = vsyncadd [#allocation5], %s35
      %s37 = sshll.u32 [#allocation4], 4
      %s38 = int_to_ptr.vmem [resolvable:$true] %s37
      %43 = dma.hbm_to_vmem [thread:$0]  %s2, 6144, %s38, [#allocation5], 64, 64, 4
    $region13: #{forward.1} parent=1 // pred_fallthru
      _
    // Predicated region
    $region14: #{forward.1} parent=1 // pred_check
      _
    $region15: #{forward.1} parent=1 // pred_check_branch
      %45 = sbr.rel (0) target = $region17
    $region16: #{forward.1} parent=1 // pred_region
      %s47 = ssub.s32 3072, 3072
      %48 = vsyncadd [#allocation5], %s47
      %s49 = sshll.u32 [#allocation6], 4
      %s50 = int_to_ptr.vmem [resolvable:$true] %s49
      %55 = dma.hbm_to_vmem [thread:$0]  %s3, 3072, %s50, [#allocation5], 64, 64, 4
    $region17: #{forward.1} parent=1 // pred_fallthru
      _
    // Predicated region
    $region18: #{forward.1} parent=1 // pred_check
      _
    $region19: #{forward.1} parent=1 // pred_check_branch
      %57 = sbr.rel (0) target = $region21
    $region20: #{forward.1} parent=1 // pred_region
      %s59 = ssub.s32 3072, 3072
      %60 = vsyncadd [#allocation8], %s59
      %s61 = sshll.u32 [#allocation7], 4
      %s62 = int_to_ptr.vmem [resolvable:$true] %s61
      %67 = dma.hbm_to_vmem [thread:$0]  %s4, 3072, %s62, [#allocation8], 64, 64, 4
    $region21: #{forward.1} parent=1 // pred_fallthru
      _
    // Predicated region
    $region22: #{forward.1} parent=1 // pred_check
      _
    $region23: #{forward.1} parent=1 // pred_check_branch
      %69 = sbr.rel (0) target = $region25
    $region24: #{forward.1} parent=1 // pred_region
      _
    $region25: #{forward.1} parent=1 // pred_fallthru
      _
    // Predicated region
    $region26: #{forward.1} parent=1 // pred_check
      _
    $region27: #{forward.1} parent=1 // pred_check_branch
      %71 = sbr.rel (0) target = $region29
    $region28: #{forward.1} parent=1 // pred_region
      %s73 = ssub.s32 512, 512
      %74 = vsyncadd [#allocation8], %s73
      %s75 = sshll.u32 [#allocation9], 4
      %s76 = int_to_ptr.vmem [resolvable:$true] %s75
      %81 = dma.hbm_to_vmem [thread:$0]  %s6, 512, %s76, [#allocation8], 128, 128, 8
    $region29: #{forward.1} parent=1 // pred_fallthru
      _
    // Predicated region
    $region30: #{forward.1} parent=1 // pred_check
      _
    $region31: #{forward.1} parent=1 // pred_check_branch
      %83 = sbr.rel (0) target = $region33
    $region32: #{forward.1} parent=1 // pred_region
      %s85 = ssub.s32 6144, 6144
      %86 = vsyncadd [#allocation11], %s85
      %s87 = sshll.u32 [#allocation10], 4
      %s88 = int_to_ptr.vmem [resolvable:$true] %s87
      %93 = dma.hbm_to_vmem [thread:$0]  %s7, 6144, %s88, [#allocation11], 128, 128, 8
    $region33: #{forward.1} parent=1 // pred_fallthru
      _
    // Predicated region
    $region34: #{forward.1} parent=1 // pred_check
      _
    $region35: #{forward.1} parent=1 // pred_check_branch
      %95 = sbr.rel (0) target = $region37
    $region36: #{forward.1} parent=1 // pred_region
      _
    $region37: #{forward.1} parent=1 // pred_fallthru
      _
    // Predicated region
    $region38: #{forward.1} parent=1 // pred_check
      _
    $region39: #{forward.1} parent=1 // pred_check_branch
      %97 = sbr.rel (0) target = $region41
    $region40: #{forward.1} parent=1 // pred_region
      %98 = dma.done [#allocation3], 512
    $region41: #{forward.1} parent=1 // pred_fallthru
      _
    // Predicated region
    $region42: #{forward.1} parent=1 // pred_check
      _
    $region43: #{forward.1} parent=1 // pred_check_branch
      %100 = sbr.rel (0) target = $region45
    $region44: #{forward.1} parent=1 // pred_region
      %101 = dma.done [#allocation5], 6144
    $region45: #{forward.1} parent=1 // pred_fallthru
      _
    // Predicated region
    $region46: #{forward.1} parent=1 // pred_check
      _
    $region47: #{forward.1} parent=1 // pred_check_branch
      %103 = sbr.rel (0) target = $region49
    $region48: #{forward.1} parent=1 // pred_region
      %104 = dma.done [#allocation5], 3072
    $region49: #{forward.1} parent=1 // pred_fallthru
      _
    // Predicated region
    $region50: #{forward.1} parent=1 // pred_check
      _
    $region51: #{forward.1} parent=1 // pred_check_branch
      %106 = sbr.rel (0) target = $region53
    $region52: #{forward.1} parent=1 // pred_region
      %107 = dma.done [#allocation8], 3072
    $region53: #{forward.1} parent=1 // pred_fallthru
      _
    // Predicated region
    $region54: #{forward.1} parent=1 // pred_check
      _
    $region55: #{forward.1} parent=1 // pred_check_branch
      %109 = sbr.rel (0) target = $region57
    $region56: #{forward.1} parent=1 // pred_region
      %110 = dma.done [#allocation8], 512
    $region57: #{forward.1} parent=1 // pred_fallthru
      _
    // Predicated region
    $region58: #{forward.1} parent=1 // pred_check
      _
    $region59: #{forward.1} parent=1 // pred_check_branch
      %112 = sbr.rel (0) target = $region61
    $region60: #{forward.1} parent=1 // pred_region
      %113 = dma.done [#allocation11], 6144
    $region61: #{forward.1} parent=1 // pred_fallthru
      _
    %v115 = vld [vmem:[%s0] sm:$0xff]
    %v116 = vlaneseq
    %v117 = vand.u32 %v116, 127
    %vm118 = vcmp.lt.s32.totalorder %v117, 96
    %v119 = vsel %vm118, 1, 0
    %v120 = vcvt.s32.f32 %v119
    %v121 = vld [vmem:[#allocation2] sm:$0xff]
    %v122 = vld [vmem:[#allocation2 + $0x8] sm:$0xff]
    %v123 = vld [vmem:[#allocation2 + $0x10] sm:$0xff]
    %v124 = vld [vmem:[#allocation2 + $0x18] sm:$0xff]
    %v125 = vpack.c.bf16 %v115, %v115
    %v126 = vpack.c.bf16 %v122, %v121
    %v127 = vpack.c.bf16 %v124, %v123
    %128 = vmatprep.subr.bf16.mxu0 0
    %129 = vmatpush1.bf16.xpose.msra.mxu0 %v126
    %130 = vmatprep.subr.bf16.mxu0 0
    %131 = vmatpush1.bf16.xpose.msra.mxu0 %v127
    %132 = vmatprep.subr.bf16.mxu0 0
    %133 = vmatpush1.bf16.xpose.msra.mxu0 0
    %134 = vmatprep.subr.bf16.mxu0 0
    %135 = vmatpush1.bf16.xpose.msra.mxu0 0
    %136 = vmatprep.subr.bf16.mxu0 0
    %137 = vmatpush1.bf16.xpose.msra.mxu0 0
    %138 = vmatprep.subr.bf16.mxu0 0
    %139 = vmatpush1.bf16.xpose.msra.mxu0 0
    %140 = vmatprep.subr.bf16.mxu0 0
    %141 = vmatpush1.bf16.xpose.msra.mxu0 0
    %142 = vmatprep.subr.bf16.mxu0 0
    %143 = vmatpush1.bf16.xpose.msra.mxu0 0
    %144 = vmatprep.subr.bf16.mxu0 0
    %145 = vmatpush1.bf16.xpose.msra.mxu0 0
    %146 = vmatprep.subr.bf16.mxu0 0
    %147 = vmatpush1.bf16.xpose.msra.mxu0 0
    %148 = vmatprep.subr.bf16.mxu0 0
    %149 = vmatpush1.bf16.xpose.msra.mxu0 0
    %150 = vmatprep.subr.bf16.mxu0 0
    %151 = vmatpush1.bf16.xpose.msra.mxu0 0
    %152 = vmatprep.subr.bf16.mxu0 0
    %153 = vmatpush1.bf16.xpose.msra.mxu0 0
    %154 = vmatprep.subr.bf16.mxu0 0
    %155 = vmatpush1.bf16.xpose.msra.mxu0 0
    %156 = vmatprep.subr.bf16.mxu0 0
    %157 = vmatpush1.bf16.xpose.msra.mxu0 0
    %158 = vmatprep.subr.bf16.mxu0 0
    %159 = vmatpush1.bf16.xpose.msra.mxu0 0
    %160 = vmatprep.mubr.bf16.mxu0 0
    %161 = vmatmul.mubr.bf16.gmra.mrb[0].mxu0 %v125
    %v162 = vpop.f32.mrb[0].mxu0
    %v163 = vadd.f32 0.0, %v162
    %v164 = vpop.f32.mrb[0].mxu0
    %v165 = vpop.f32.mrb[0].mxu0
    %v166 = vpop.f32.mrb[0].mxu0
    %167 = vdwg.mxu0
    %vm168 = vcmask 31744
    %v169 = vsel %vm168, %v163, -inf
    %170 = vmax.xlane.f32.xlu0 %v169
    %v171 = vpop.xlane.xlu0 %170
    %v172 = vsub.f32 %v163, %v171
    %v173 = vmul.f32 %v172, 1.442695
    %v174 = vpow.pop %v173
    %v175 = vsel %vm168, %v174, 0.0
    %176 = vadd.xlane.f32.xlu0 %v175
    %v177 = vpop.xlane.xlu0 %176
    %v178 = vrcp.pop %v177
    %v179 = vmul.f32 %v174, %v178
    %v180 = vpack.c.bf16 %v179, %v179
    %v181 = vpack.c.bf16 %v121, %v121
    %v183 = vsel %vm168, %v180, 0
    %vm185 = vcmask 1041408
    %v187 = vsel %vm185, %v181, 0
    %189 = vmatprep.subr.bf16.mxu0 0
    %190 = vmatpush1.bf16.msra.mxu0 %v187
    %191 = vmatprep.subr.bf16.mxu0 0
    %192 = vmatpush1.bf16.msra.mxu0 0
    %193 = vmatprep.subr.bf16.mxu0 0
    %194 = vmatpush1.bf16.msra.mxu0 0
    %195 = vmatprep.subr.bf16.mxu0 0
    %196 = vmatpush1.bf16.msra.mxu0 0
    %197 = vmatprep.subr.bf16.mxu0 0
    %198 = vmatpush1.bf16.msra.mxu0 0
    %199 = vmatprep.subr.bf16.mxu0 0
    %200 = vmatpush1.bf16.msra.mxu0 0
    %201 = vmatprep.subr.bf16.mxu0 0
    %202 = vmatpush1.bf16.msra.mxu0 0
    %203 = vmatprep.subr.bf16.mxu0 0
    %204 = vmatpush1.bf16.msra.mxu0 0
    %205 = vmatprep.subr.bf16.mxu0 0
    %206 = vmatpush1.bf16.msra.mxu0 0
    %207 = vmatprep.subr.bf16.mxu0 0
    %208 = vmatpush1.bf16.msra.mxu0 0
    %209 = vmatprep.subr.bf16.mxu0 0
    %210 = vmatpush1.bf16.msra.mxu0 0
    %211 = vmatprep.subr.bf16.mxu0 0
    %212 = vmatpush1.bf16.msra.mxu0 0
    %213 = vmatprep.subr.bf16.mxu0 0
    %214 = vmatpush1.bf16.msra.mxu0 0
    %215 = vmatprep.subr.bf16.mxu0 0
    %216 = vmatpush1.bf16.msra.mxu0 0
    %217 = vmatprep.subr.bf16.mxu0 0
    %218 = vmatpush1.bf16.msra.mxu0 0
    %219 = vmatprep.subr.bf16.mxu0 0
    %220 = vmatpush1.bf16.msra.mxu0 0
    %221 = vmatprep.mubr.bf16.mxu0 0
    %222 = vmatmul.mubr.bf16.gmra.mrb[0].mxu0 %v183
    %v223 = vpop.f32.mrb[0].mxu0
    %v224 = vadd.f32 0.0, %v223
    %v225 = vpop.f32.mrb[0].mxu0
    %v226 = vpop.f32.mrb[0].mxu0
    %v227 = vpop.f32.mrb[0].mxu0
    %228 = vdwg.mxu0
    %v229 = vld [vmem:[%s5] sm:$0xf]
    %v230 = vpack.c.bf16 %v224, %v224
    %v231 = vld [vmem:[#allocation4] sm:$0xf]
    %v232 = vld [vmem:[#allocation4 + $0x4] sm:$0xf]
    %v233 = vld [vmem:[#allocation4 + $0x8] sm:$0xf]
    %v234 = vld [vmem:[#allocation4 + $0xc] sm:$0xf]
    %v235 = vld [vmem:[#allocation4 + $0x10] sm:$0xf]
    %v236 = vld [vmem:[#allocation4 + $0x14] sm:$0xf]
    %v237 = vld [vmem:[#allocation4 + $0x18] sm:$0xf]
    %v238 = vld [vmem:[#allocation4 + $0x1c] sm:$0xf]
    %v239 = vld [vmem:[#allocation4 + $0x20] sm:$0xf]
    %v240 = vld [vmem:[#allocation4 + $0x24] sm:$0xf]
    %v241 = vld [vmem:[#allocation4 + $0x28] sm:$0xf]
    %v242 = vld [vmem:[#allocation4 + $0x2c] sm:$0xf]
    %v243 = vld [vmem:[#allocation4 + $0x30] sm:$0xf]
    %v244 = vld [vmem:[#allocation4 + $0x34] sm:$0xf]
    %v245 = vld [vmem:[#allocation4 + $0x38] sm:$0xf]
    %v246 = vld [vmem:[#allocation4 + $0x3c] sm:$0xf]
    %v247 = vld [vmem:[#allocation4 + $0x40] sm:$0xf]
    %v248 = vld [vmem:[#allocation4 + $0x44] sm:$0xf]
    %v249 = vld [vmem:[#allocation4 + $0x48] sm:$0xf]
    %v250 = vld [vmem:[#allocation4 + $0x4c] sm:$0xf]
    %v251 = vld [vmem:[#allocation4 + $0x50] sm:$0xf]
    %v252 = vld [vmem:[#allocation4 + $0x54] sm:$0xf]
    %v253 = vld [vmem:[#allocation4 + $0x58] sm:$0xf]
    %v254 = vld [vmem:[#allocation4 + $0x5c] sm:$0xf]
    %v255 = vld [vmem:[#allocation4 + $0x60] sm:$0xf]
    %v256 = vld [vmem:[#allocation4 + $0x64] sm:$0xf]
    %v257 = vld [vmem:[#allocation4 + $0x68] sm:$0xf]
    %v258 = vld [vmem:[#allocation4 + $0x6c] sm:$0xf]
    %v259 = vld [vmem:[#allocation4 + $0x70] sm:$0xf]
    %v260 = vld [vmem:[#allocation4 + $0x74] sm:$0xf]
    %v261 = vld [vmem:[#allocation4 + $0x78] sm:$0xf]
    %v262 = vld [vmem:[#allocation4 + $0x7c] sm:$0xf]
    %v263 = vlaneseq
    %v264 = vshrl.u32 %v263, 7
    %v265 = vsub.s32 0, %v264
    %v266 = vrot.slane %v229, %v265
    %v299 = vunpack.c.l.b16 %v231
    %v300 = vunpack.c.l.b16 %v232
    %v301 = vunpack.c.l.b16 %v233
    %v302 = vunpack.c.l.b16 %v234
    %v303 = vunpack.c.l.b16 %v235
    %v304 = vunpack.c.l.b16 %v236
    %v305 = vunpack.c.l.b16 %v237
    %v306 = vunpack.c.l.b16 %v238
    %v307 = vunpack.c.l.b16 %v239
    %v308 = vunpack.c.l.b16 %v240
    %v309 = vunpack.c.l.b16 %v241
    %v310 = vunpack.c.l.b16 %v242
    %v311 = vunpack.c.l.b16 %v243
    %v312 = vunpack.c.l.b16 %v244
    %v313 = vunpack.c.l.b16 %v245
    %v314 = vunpack.c.l.b16 %v246
    %v315 = vunpack.c.l.b16 %v247
    %v316 = vunpack.c.l.b16 %v248
    %v317 = vunpack.c.l.b16 %v249
    %v318 = vunpack.c.l.b16 %v250
    %v319 = vunpack.c.l.b16 %v251
    %v320 = vunpack.c.l.b16 %v252
    %v321 = vunpack.c.l.b16 %v253
    %v322 = vunpack.c.l.b16 %v254
    %v323 = vunpack.c.l.b16 %v255
    %v324 = vunpack.c.l.b16 %v256
    %v325 = vunpack.c.l.b16 %v257
    %v326 = vunpack.c.l.b16 %v258
    %v327 = vunpack.c.l.b16 %v259
    %v328 = vunpack.c.l.b16 %v260
    %v329 = vunpack.c.l.b16 %v261
    %v330 = vunpack.c.l.b16 %v262
    %v331 = vpack.c.b16 %v300, %v299
    %v332 = vpack.c.b16 %v302, %v301
    %v333 = vpack.c.b16 %v304, %v303
    %v334 = vpack.c.b16 %v306, %v305
    %v335 = vpack.c.b16 %v308, %v307
    %v336 = vpack.c.b16 %v310, %v309
    %v337 = vpack.c.b16 %v312, %v311
    %v338 = vpack.c.b16 %v314, %v313
    %v339 = vpack.c.b16 %v316, %v315
    %v340 = vpack.c.b16 %v318, %v317
    %v341 = vpack.c.b16 %v320, %v319
    %v342 = vpack.c.b16 %v322, %v321
    %v343 = vpack.c.b16 %v324, %v323
    %v344 = vpack.c.b16 %v326, %v325
    %v345 = vpack.c.b16 %v328, %v327
    %v346 = vpack.c.b16 %v330, %v329
    %363 = vmatprep.subr.bf16.mxu0 0
    %364 = vmatpush1.bf16.msra.mxu0 %v331
    %365 = vmatprep.subr.bf16.mxu0 0
    %366 = vmatpush1.bf16.msra.mxu0 %v332
    %367 = vmatprep.subr.bf16.mxu0 0
    %368 = vmatpush1.bf16.msra.mxu0 %v333
    %369 = vmatprep.subr.bf16.mxu0 0
    %370 = vmatpush1.bf16.msra.mxu0 %v334
    %371 = vmatprep.subr.bf16.mxu0 0
    %372 = vmatpush1.bf16.msra.mxu0 %v335
    %373 = vmatprep.subr.bf16.mxu0 0
    %374 = vmatpush1.bf16.msra.mxu0 %v336
    %375 = vmatprep.subr.bf16.mxu0 0
    %376 = vmatpush1.bf16.msra.mxu0 %v337
    %377 = vmatprep.subr.bf16.mxu0 0
    %378 = vmatpush1.bf16.msra.mxu0 %v338
    %379 = vmatprep.subr.bf16.mxu0 0
    %380 = vmatpush1.bf16.msra.mxu0 %v339
    %381 = vmatprep.subr.bf16.mxu0 0
    %382 = vmatpush1.bf16.msra.mxu0 %v340
    %383 = vmatprep.subr.bf16.mxu0 0
    %384 = vmatpush1.bf16.msra.mxu0 %v341
    %385 = vmatprep.subr.bf16.mxu0 0
    %386 = vmatpush1.bf16.msra.mxu0 %v342
    %387 = vmatprep.subr.bf16.mxu0 0
    %388 = vmatpush1.bf16.msra.mxu0 %v343
    %389 = vmatprep.subr.bf16.mxu0 0
    %390 = vmatpush1.bf16.msra.mxu0 %v344
    %391 = vmatprep.subr.bf16.mxu0 0
    %392 = vmatpush1.bf16.msra.mxu0 %v345
    %393 = vmatprep.subr.bf16.mxu0 0
    %394 = vmatpush1.bf16.msra.mxu0 %v346
    %395 = vmatprep.mubr.bf16.mxu0 %v230
    %396 = vmatmul.mubr.bf16.gmra.mrb[0].mxu0 %v125
    %v397 = vpop.f32.mrb[0].mxu0
    %v398 = vadd.f32 %v266, %v397
    %v399 = vpop.f32.mrb[0].mxu0
    %v400 = vpop.f32.mrb[0].mxu0
    %v401 = vpop.f32.mrb[0].mxu0
    %402 = vdwg.mxu0
    %v403 = vxor.u32 %v398, 2147483648
    %v404 = vmul.f32 %v403, 1.442695
    %v405 = vpow.pop %v404
    %v406 = vadd.f32 %v405, 1.0
    %v407 = vrcp.pop %v406
    %v408 = vmul.f32 1.0, %v407
    %v409 = vmul.f32 %v408, %v115
    %v410 = vsub.f32 1.0, %v408
    %v411 = vmul.f32 %v410, %v224
    %v412 = vadd.f32 %v409, %v411
    %v413 = vpack.c.bf16 %v412, %v412
    %v414 = vld [vmem:[#allocation6] sm:$0xf]
    %v415 = vld [vmem:[#allocation6 + $0x4] sm:$0xf]
    %v416 = vld [vmem:[#allocation6 + $0x8] sm:$0xf]
    %v417 = vld [vmem:[#allocation6 + $0xc] sm:$0xf]
    %v418 = vld [vmem:[#allocation6 + $0x10] sm:$0xf]
    %v419 = vld [vmem:[#allocation6 + $0x14] sm:$0xf]
    %v420 = vld [vmem:[#allocation6 + $0x18] sm:$0xf]
    %v421 = vld [vmem:[#allocation6 + $0x1c] sm:$0xf]
    %v422 = vld [vmem:[#allocation6 + $0x20] sm:$0xf]
    %v423 = vld [vmem:[#allocation6 + $0x24] sm:$0xf]
    %v424 = vld [vmem:[#allocation6 + $0x28] sm:$0xf]
    %v425 = vld [vmem:[#allocation6 + $0x2c] sm:$0xf]
    %v426 = vld [vmem:[#allocation6 + $0x30] sm:$0xf]
    %v427 = vld [vmem:[#allocation6 + $0x34] sm:$0xf]
    %v428 = vld [vmem:[#allocation6 + $0x38] sm:$0xf]
    %v429 = vld [vmem:[#allocation6 + $0x3c] sm:$0xf]
    %v446 = vunpack.c.l.b16 %v414
    %v447 = vunpack.c.l.b16 %v415
    %v448 = vunpack.c.l.b16 %v416
    %v449 = vunpack.c.l.b16 %v417
    %v450 = vunpack.c.l.b16 %v418
    %v451 = vunpack.c.l.b16 %v419
    %v452 = vunpack.c.l.b16 %v420
    %v453 = vunpack.c.l.b16 %v421
    %v454 = vunpack.c.l.b16 %v422
    %v455 = vunpack.c.l.b16 %v423
    %v456 = vunpack.c.l.b16 %v424
    %v457 = vunpack.c.l.b16 %v425
    %v458 = vunpack.c.l.b16 %v426
    %v459 = vunpack.c.l.b16 %v427
    %v460 = vunpack.c.l.b16 %v428
    %v461 = vunpack.c.l.b16 %v429
    %v462 = vpack.c.b16 %v447, %v446
    %v463 = vpack.c.b16 %v449, %v448
    %v464 = vpack.c.b16 %v451, %v450
    %v465 = vpack.c.b16 %v453, %v452
    %v466 = vpack.c.b16 %v455, %v454
    %v467 = vpack.c.b16 %v457, %v456
    %v468 = vpack.c.b16 %v459, %v458
    %v469 = vpack.c.b16 %v461, %v460
    %478 = vmatprep.subr.bf16.mxu0 0
    %479 = vmatpush1.bf16.msra.mxu0 %v462
    %480 = vmatprep.subr.bf16.mxu0 0
    %481 = vmatpush1.bf16.msra.mxu0 %v463
    %482 = vmatprep.subr.bf16.mxu0 0
    %483 = vmatpush1.bf16.msra.mxu0 %v464
    %484 = vmatprep.subr.bf16.mxu0 0
    %485 = vmatpush1.bf16.msra.mxu0 %v465
    %486 = vmatprep.subr.bf16.mxu0 0
    %487 = vmatpush1.bf16.msra.mxu0 %v466
    %488 = vmatprep.subr.bf16.mxu0 0
    %489 = vmatpush1.bf16.msra.mxu0 %v467
    %490 = vmatprep.subr.bf16.mxu0 0
    %491 = vmatpush1.bf16.msra.mxu0 %v468
    %492 = vmatprep.subr.bf16.mxu0 0
    %493 = vmatpush1.bf16.msra.mxu0 %v469
    %494 = vmatprep.subr.bf16.mxu0 0
    %495 = vmatpush1.bf16.msra.mxu0 0
    %496 = vmatprep.subr.bf16.mxu0 0
    %497 = vmatpush1.bf16.msra.mxu0 0
    %498 = vmatprep.subr.bf16.mxu0 0
    %499 = vmatpush1.bf16.msra.mxu0 0
    %500 = vmatprep.subr.bf16.mxu0 0
    %501 = vmatpush1.bf16.msra.mxu0 0
    %502 = vmatprep.subr.bf16.mxu0 0
    %503 = vmatpush1.bf16.msra.mxu0 0
    %504 = vmatprep.subr.bf16.mxu0 0
    %505 = vmatpush1.bf16.msra.mxu0 0
    %506 = vmatprep.subr.bf16.mxu0 0
    %507 = vmatpush1.bf16.msra.mxu0 0
    %508 = vmatprep.subr.bf16.mxu0 0
    %509 = vmatpush1.bf16.msra.mxu0 0
    %510 = vmatprep.mubr.bf16.mxu0 0
    %511 = vmatmul.mubr.bf16.gmra.mrb[0].mxu0 %v413
    %v512 = vpop.f32.mrb[0].mxu0
    %v513 = vadd.f32 0.0, %v512
    %v514 = vpop.f32.mrb[0].mxu0
    %v515 = vpop.f32.mrb[0].mxu0
    %v516 = vpop.f32.mrb[0].mxu0
    %517 = vdwg.mxu0
    %v518 = vmax.f32 %v513, 0.0
    %v519 = vpack.c.bf16 %v518, %v518
    %v520 = vld [vmem:[#allocation7] sm:$0xf]
    %v521 = vld [vmem:[#allocation7 + $0x4] sm:$0xf]
    %v522 = vld [vmem:[#allocation7 + $0x8] sm:$0xf]
    %v523 = vld [vmem:[#allocation7 + $0xc] sm:$0xf]
    %v524 = vld [vmem:[#allocation7 + $0x10] sm:$0xf]
    %v525 = vld [vmem:[#allocation7 + $0x14] sm:$0xf]
    %v526 = vld [vmem:[#allocation7 + $0x18] sm:$0xf]
    %v527 = vld [vmem:[#allocation7 + $0x1c] sm:$0xf]
    %v528 = vld [vmem:[#allocation7 + $0x20] sm:$0xf]
    %v529 = vld [vmem:[#allocation7 + $0x24] sm:$0xf]
    %v530 = vld [vmem:[#allocation7 + $0x28] sm:$0xf]
    %v531 = vld [vmem:[#allocation7 + $0x2c] sm:$0xf]
    %v532 = vld [vmem:[#allocation7 + $0x30] sm:$0xf]
    %v533 = vld [vmem:[#allocation7 + $0x34] sm:$0xf]
    %v534 = vld [vmem:[#allocation7 + $0x38] sm:$0xf]
    %v535 = vld [vmem:[#allocation7 + $0x3c] sm:$0xf]
    %v552 = vunpack.c.l.b16 %v520
    %v553 = vunpack.c.l.b16 %v521
    %v554 = vunpack.c.l.b16 %v522
    %v555 = vunpack.c.l.b16 %v523
    %v556 = vunpack.c.l.b16 %v524
    %v557 = vunpack.c.l.b16 %v525
    %v558 = vunpack.c.l.b16 %v526
    %v559 = vunpack.c.l.b16 %v527
    %v560 = vunpack.c.l.b16 %v528
    %v561 = vunpack.c.l.b16 %v529
    %v562 = vunpack.c.l.b16 %v530
    %v563 = vunpack.c.l.b16 %v531
    %v564 = vunpack.c.l.b16 %v532
    %v565 = vunpack.c.l.b16 %v533
    %v566 = vunpack.c.l.b16 %v534
    %v567 = vunpack.c.l.b16 %v535
    %v568 = vpack.c.b16 %v553, %v552
    %v569 = vpack.c.b16 %v555, %v554
    %v570 = vpack.c.b16 %v557, %v556
    %v571 = vpack.c.b16 %v559, %v558
    %v572 = vpack.c.b16 %v561, %v560
    %v573 = vpack.c.b16 %v563, %v562
    %v574 = vpack.c.b16 %v565, %v564
    %v575 = vpack.c.b16 %v567, %v566
    %584 = vmatprep.subr.bf16.mxu0 0
    %585 = vmatpush1.bf16.msra.mxu0 %v568
    %586 = vmatprep.subr.bf16.mxu0 0
    %587 = vmatpush1.bf16.msra.mxu0 %v569
    %588 = vmatprep.subr.bf16.mxu0 0
    %589 = vmatpush1.bf16.msra.mxu0 %v570
    %590 = vmatprep.subr.bf16.mxu0 0
    %591 = vmatpush1.bf16.msra.mxu0 %v571
    %592 = vmatprep.subr.bf16.mxu0 0
    %593 = vmatpush1.bf16.msra.mxu0 %v572
    %594 = vmatprep.subr.bf16.mxu0 0
    %595 = vmatpush1.bf16.msra.mxu0 %v573
    %596 = vmatprep.subr.bf16.mxu0 0
    %597 = vmatpush1.bf16.msra.mxu0 %v574
    %598 = vmatprep.subr.bf16.mxu0 0
    %599 = vmatpush1.bf16.msra.mxu0 %v575
    %600 = vmatprep.subr.bf16.mxu0 0
    %601 = vmatpush1.bf16.msra.mxu0 0
    %602 = vmatprep.subr.bf16.mxu0 0
    %603 = vmatpush1.bf16.msra.mxu0 0
    %604 = vmatprep.subr.bf16.mxu0 0
    %605 = vmatpush1.bf16.msra.mxu0 0
    %606 = vmatprep.subr.bf16.mxu0 0
    %607 = vmatpush1.bf16.msra.mxu0 0
    %608 = vmatprep.subr.bf16.mxu0 0
    %609 = vmatpush1.bf16.msra.mxu0 0
    %610 = vmatprep.subr.bf16.mxu0 0
    %611 = vmatpush1.bf16.msra.mxu0 0
    %612 = vmatprep.subr.bf16.mxu0 0
    %613 = vmatpush1.bf16.msra.mxu0 0
    %614 = vmatprep.subr.bf16.mxu0 0
    %615 = vmatpush1.bf16.msra.mxu0 0
    %616 = vmatprep.mubr.bf16.mxu0 0
    %617 = vmatmul.mubr.bf16.gmra.mrb[0].mxu0 %v519
    %v618 = vpop.f32.mrb[0].mxu0
    %v619 = vadd.f32 %v115, %v618
    %v620 = vpop.f32.mrb[0].mxu0
    %v621 = vpop.f32.mrb[0].mxu0
    %v622 = vpop.f32.mrb[0].mxu0
    %623 = vdwg.mxu0
    %624 = vadd.xlane.f32.xlu0 %v619
    %v625 = vpop.xlane.xlu0 %624
    %v626 = vmul.f32 %v625, 0.010416667
    %v627 = vsub.f32 %v619, %v626
    %v628 = vmul.f32 %v627, %v120
    %v629 = vmul.f32 %v628, %v628
    %630 = vadd.xlane.f32.xlu0 %v629
    %v631 = vpop.xlane.xlu0 %630
    %v632 = vmul.f32 %v631, 0.010416667
    %v633 = vadd.f32 %v632, 1e-05
    %v634 = vrsqrt.pop %v633
    %v635 = vmul.f32 %v627, %v634
    %v636 = vlaneseq
    %v637 = vshrl.u32 %v636, 7
    %v638 = vsub.s32 1, %v637
    %v639 = vrot.slane %v229, %v638
    %v640 = vmul.f32 %v635, %v639
    %v641 = vlaneseq
    %v642 = vshrl.u32 %v641, 7
    %v643 = vsub.s32 2, %v642
    %v644 = vrot.slane %v229, %v643
    %v645 = vadd.f32 %v640, %v644
    %v646 = vlaneseq
    %v647 = vshrl.u32 %v646, 7
    %v648 = vsub.s32 3, %v647
    %v649 = vrot.slane %v229, %v648
    %v650 = vmul.f32 %v645, %v649
    %651 = vadd.xlane.f32.xlu0 %v650
    %v652 = vpop.xlane.xlu0 %651
    %v653 = vadd.f32 %v652, 0.0
    %vm654 = vcmask 97312
    %v655 = vsel %vm654, %v163, -inf
    %656 = vmax.xlane.f32.xlu0 %v655
    %v657 = vpop.xlane.xlu0 %656
    %v658 = vsub.f32 %v163, %v657
    %v659 = vmul.f32 %v658, 1.442695
    %v660 = vpow.pop %v659
    %662 = vrot.lane.b32.xlu0 %v660, 124
    %v663 = vpop.permute.xlu0 %662
    %vm665 = vcmask 64512
    %v666 = vsel %vm665, %v663, 0.0
    %667 = vadd.xlane.f32.xlu0 %v666
    %v668 = vpop.xlane.xlu0 %667
    %v669 = vrcp.pop %v668
    %v670 = vmul.f32 %v660, %v669
    %v671 = vpack.c.bf16 %v670, %v670
    %673 = vrot.lane.b32.xlu0 %v671, 124
    %v674 = vpop.permute.xlu0 %673
    %v676 = vrot.slane %v126, 2
    %v678 = vsel %vm665, %v674, 0
    %vm680 = vcmask 1043456
    %v682 = vsel %vm680, %v676, 0
    %684 = vmatprep.subr.bf16.mxu0 0
    %685 = vmatpush1.bf16.msra.mxu0 %v682
    %686 = vmatprep.subr.bf16.mxu0 0
    %687 = vmatpush1.bf16.msra.mxu0 0
    %688 = vmatprep.subr.bf16.mxu0 0
    %689 = vmatpush1.bf16.msra.mxu0 0
    %690 = vmatprep.subr.bf16.mxu0 0
    %691 = vmatpush1.bf16.msra.mxu0 0
    %692 = vmatprep.subr.bf16.mxu0 0
    %693 = vmatpush1.bf16.msra.mxu0 0
    %694 = vmatprep.subr.bf16.mxu0 0
    %695 = vmatpush1.bf16.msra.mxu0 0
    %696 = vmatprep.subr.bf16.mxu0 0
    %697 = vmatpush1.bf16.msra.mxu0 0
    %698 = vmatprep.subr.bf16.mxu0 0
    %699 = vmatpush1.bf16.msra.mxu0 0
    %700 = vmatprep.subr.bf16.mxu0 0
    %701 = vmatpush1.bf16.msra.mxu0 0
    %702 = vmatprep.subr.bf16.mxu0 0
    %703 = vmatpush1.bf16.msra.mxu0 0
    %704 = vmatprep.subr.bf16.mxu0 0
    %705 = vmatpush1.bf16.msra.mxu0 0
    %706 = vmatprep.subr.bf16.mxu0 0
    %707 = vmatpush1.bf16.msra.mxu0 0
    %708 = vmatprep.subr.bf16.mxu0 0
    %709 = vmatpush1.bf16.msra.mxu0 0
    %710 = vmatprep.subr.bf16.mxu0 0
    %711 = vmatpush1.bf16.msra.mxu0 0
    %712 = vmatprep.subr.bf16.mxu0 0
    %713 = vmatpush1.bf16.msra.mxu0 0
    %714 = vmatprep.subr.bf16.mxu0 0
    %715 = vmatpush1.bf16.msra.mxu0 0
    %716 = vmatprep.mubr.bf16.mxu0 0
    %717 = vmatmul.mubr.bf16.gmra.mrb[0].mxu0 %v678
    %v718 = vpop.f32.mrb[0].mxu0
    %v719 = vadd.f32 0.0, %v718
    %v720 = vpop.f32.mrb[0].mxu0
    %v721 = vpop.f32.mrb[0].mxu0
    %v722 = vpop.f32.mrb[0].mxu0
    %723 = vdwg.mxu0
    %s724 = scalar_lea.vmem %s5, 4
    %v725 = vld [vmem:[%s724] sm:$0xf]
    %v726 = vpack.c.bf16 %v719, %v719
    %s727 = scalar_lea.vmem [#allocation4], 128
    %v728 = vld [vmem:[%s727] sm:$0xf]
    %v729 = vld [vmem:[%s727 + $0x4] sm:$0xf]
    %v730 = vld [vmem:[%s727 + $0x8] sm:$0xf]
    %v731 = vld [vmem:[%s727 + $0xc] sm:$0xf]
    %v732 = vld [vmem:[%s727 + $0x10] sm:$0xf]
    %v733 = vld [vmem:[%s727 + $0x14] sm:$0xf]
    %v734 = vld [vmem:[%s727 + $0x18] sm:$0xf]
    %v735 = vld [vmem:[%s727 + $0x1c] sm:$0xf]
    %v736 = vld [vmem:[%s727 + $0x20] sm:$0xf]
    %v737 = vld [vmem:[%s727 + $0x24] sm:$0xf]
    %v738 = vld [vmem:[%s727 + $0x28] sm:$0xf]
    %v739 = vld [vmem:[%s727 + $0x2c] sm:$0xf]
    %v740 = vld [vmem:[%s727 + $0x30] sm:$0xf]
    %v741 = vld [vmem:[%s727 + $0x34] sm:$0xf]
    %v742 = vld [vmem:[%s727 + $0x38] sm:$0xf]
    %v743 = vld [vmem:[%s727 + $0x3c] sm:$0xf]
    %v744 = vld [vmem:[%s727 + $0x40] sm:$0xf]
    %v745 = vld [vmem:[%s727 + $0x44] sm:$0xf]
    %v746 = vld [vmem:[%s727 + $0x48] sm:$0xf]
    %v747 = vld [vmem:[%s727 + $0x4c] sm:$0xf]
    %v748 = vld [vmem:[%s727 + $0x50] sm:$0xf]
    %v749 = vld [vmem:[%s727 + $0x54] sm:$0xf]
    %v750 = vld [vmem:[%s727 + $0x58] sm:$0xf]
    %v751 = vld [vmem:[%s727 + $0x5c] sm:$0xf]
    %v752 = vld [vmem:[%s727 + $0x60] sm:$0xf]
    %v753 = vld [vmem:[%s727 + $0x64] sm:$0xf]
    %v754 = vld [vmem:[%s727 + $0x68] sm:$0xf]
    %v755 = vld [vmem:[%s727 + $0x6c] sm:$0xf]
    %v756 = vld [vmem:[%s727 + $0x70] sm:$0xf]
    %v757 = vld [vmem:[%s727 + $0x74] sm:$0xf]
    %v758 = vld [vmem:[%s727 + $0x78] sm:$0xf]
    %v759 = vld [vmem:[%s727 + $0x7c] sm:$0xf]
    %v760 = vlaneseq
    %v761 = vshrl.u32 %v760, 7
    %v762 = vsub.s32 0, %v761
    %v763 = vrot.slane %v725, %v762
    %v796 = vunpack.c.l.b16 %v728
    %v797 = vunpack.c.l.b16 %v729
    %v798 = vunpack.c.l.b16 %v730
    %v799 = vunpack.c.l.b16 %v731
    %v800 = vunpack.c.l.b16 %v732
    %v801 = vunpack.c.l.b16 %v733
    %v802 = vunpack.c.l.b16 %v734
    %v803 = vunpack.c.l.b16 %v735
    %v804 = vunpack.c.l.b16 %v736
    %v805 = vunpack.c.l.b16 %v737
    %v806 = vunpack.c.l.b16 %v738
    %v807 = vunpack.c.l.b16 %v739
    %v808 = vunpack.c.l.b16 %v740
    %v809 = vunpack.c.l.b16 %v741
    %v810 = vunpack.c.l.b16 %v742
    %v811 = vunpack.c.l.b16 %v743
    %v812 = vunpack.c.l.b16 %v744
    %v813 = vunpack.c.l.b16 %v745
    %v814 = vunpack.c.l.b16 %v746
    %v815 = vunpack.c.l.b16 %v747
    %v816 = vunpack.c.l.b16 %v748
    %v817 = vunpack.c.l.b16 %v749
    %v818 = vunpack.c.l.b16 %v750
    %v819 = vunpack.c.l.b16 %v751
    %v820 = vunpack.c.l.b16 %v752
    %v821 = vunpack.c.l.b16 %v753
    %v822 = vunpack.c.l.b16 %v754
    %v823 = vunpack.c.l.b16 %v755
    %v824 = vunpack.c.l.b16 %v756
    %v825 = vunpack.c.l.b16 %v757
    %v826 = vunpack.c.l.b16 %v758
    %v827 = vunpack.c.l.b16 %v759
    %v828 = vpack.c.b16 %v797, %v796
    %v829 = vpack.c.b16 %v799, %v798
    %v830 = vpack.c.b16 %v801, %v800
    %v831 = vpack.c.b16 %v803, %v802
    %v832 = vpack.c.b16 %v805, %v804
    %v833 = vpack.c.b16 %v807, %v806
    %v834 = vpack.c.b16 %v809, %v808
    %v835 = vpack.c.b16 %v811, %v810
    %v836 = vpack.c.b16 %v813, %v812
    %v837 = vpack.c.b16 %v815, %v814
    %v838 = vpack.c.b16 %v817, %v816
    %v839 = vpack.c.b16 %v819, %v818
    %v840 = vpack.c.b16 %v821, %v820
    %v841 = vpack.c.b16 %v823, %v822
    %v842 = vpack.c.b16 %v825, %v824
    %v843 = vpack.c.b16 %v827, %v826
    %860 = vmatprep.subr.bf16.mxu0 0
    %861 = vmatpush1.bf16.msra.mxu0 %v828
    %862 = vmatprep.subr.bf16.mxu0 0
    %863 = vmatpush1.bf16.msra.mxu0 %v829
    %864 = vmatprep.subr.bf16.mxu0 0
    %865 = vmatpush1.bf16.msra.mxu0 %v830
    %866 = vmatprep.subr.bf16.mxu0 0
    %867 = vmatpush1.bf16.msra.mxu0 %v831
    %868 = vmatprep.subr.bf16.mxu0 0
    %869 = vmatpush1.bf16.msra.mxu0 %v832
    %870 = vmatprep.subr.bf16.mxu0 0
    %871 = vmatpush1.bf16.msra.mxu0 %v833
    %872 = vmatprep.subr.bf16.mxu0 0
    %873 = vmatpush1.bf16.msra.mxu0 %v834
    %874 = vmatprep.subr.bf16.mxu0 0
    %875 = vmatpush1.bf16.msra.mxu0 %v835
    %876 = vmatprep.subr.bf16.mxu0 0
    %877 = vmatpush1.bf16.msra.mxu0 %v836
    %878 = vmatprep.subr.bf16.mxu0 0
    %879 = vmatpush1.bf16.msra.mxu0 %v837
    %880 = vmatprep.subr.bf16.mxu0 0
    %881 = vmatpush1.bf16.msra.mxu0 %v838
    %882 = vmatprep.subr.bf16.mxu0 0
    %883 = vmatpush1.bf16.msra.mxu0 %v839
    %884 = vmatprep.subr.bf16.mxu0 0
    %885 = vmatpush1.bf16.msra.mxu0 %v840
    %886 = vmatprep.subr.bf16.mxu0 0
    %887 = vmatpush1.bf16.msra.mxu0 %v841
    %888 = vmatprep.subr.bf16.mxu0 0
    %889 = vmatpush1.bf16.msra.mxu0 %v842
    %890 = vmatprep.subr.bf16.mxu0 0
    %891 = vmatpush1.bf16.msra.mxu0 %v843
    %892 = vmatprep.mubr.bf16.mxu0 %v726
    %893 = vmatmul.mubr.bf16.gmra.mrb[0].mxu0 %v125
    %v894 = vpop.f32.mrb[0].mxu0
    %v895 = vadd.f32 %v763, %v894
    %v896 = vpop.f32.mrb[0].mxu0
    %v897 = vpop.f32.mrb[0].mxu0
    %v898 = vpop.f32.mrb[0].mxu0
    %899 = vdwg.mxu0
    %v900 = vxor.u32 %v895, 2147483648
    %v901 = vmul.f32 %v900, 1.442695
    %v902 = vpow.pop %v901
    %v903 = vadd.f32 %v902, 1.0
    %v904 = vrcp.pop %v903
    %v905 = vmul.f32 1.0, %v904
    %v906 = vmul.f32 %v905, %v115
    %v907 = vsub.f32 1.0, %v905
    %v908 = vmul.f32 %v907, %v719
    %v909 = vadd.f32 %v906, %v908
    %v910 = vpack.c.bf16 %v909, %v909
    %s911 = scalar_lea.vmem [#allocation6], 64
    %v912 = vld [vmem:[%s911] sm:$0xf]
    %v913 = vld [vmem:[%s911 + $0x4] sm:$0xf]
    %v914 = vld [vmem:[%s911 + $0x8] sm:$0xf]
    %v915 = vld [vmem:[%s911 + $0xc] sm:$0xf]
    %v916 = vld [vmem:[%s911 + $0x10] sm:$0xf]
    %v917 = vld [vmem:[%s911 + $0x14] sm:$0xf]
    %v918 = vld [vmem:[%s911 + $0x18] sm:$0xf]
    %v919 = vld [vmem:[%s911 + $0x1c] sm:$0xf]
    %v920 = vld [vmem:[%s911 + $0x20] sm:$0xf]
    %v921 = vld [vmem:[%s911 + $0x24] sm:$0xf]
    %v922 = vld [vmem:[%s911 + $0x28] sm:$0xf]
    %v923 = vld [vmem:[%s911 + $0x2c] sm:$0xf]
    %v924 = vld [vmem:[%s911 + $0x30] sm:$0xf]
    %v925 = vld [vmem:[%s911 + $0x34] sm:$0xf]
    %v926 = vld [vmem:[%s911 + $0x38] sm:$0xf]
    %v927 = vld [vmem:[%s911 + $0x3c] sm:$0xf]
    %v944 = vunpack.c.l.b16 %v912
    %v945 = vunpack.c.l.b16 %v913
    %v946 = vunpack.c.l.b16 %v914
    %v947 = vunpack.c.l.b16 %v915
    %v948 = vunpack.c.l.b16 %v916
    %v949 = vunpack.c.l.b16 %v917
    %v950 = vunpack.c.l.b16 %v918
    %v951 = vunpack.c.l.b16 %v919
    %v952 = vunpack.c.l.b16 %v920
    %v953 = vunpack.c.l.b16 %v921
    %v954 = vunpack.c.l.b16 %v922
    %v955 = vunpack.c.l.b16 %v923
    %v956 = vunpack.c.l.b16 %v924
    %v957 = vunpack.c.l.b16 %v925
    %v958 = vunpack.c.l.b16 %v926
    %v959 = vunpack.c.l.b16 %v927
    %v960 = vpack.c.b16 %v945, %v944
    %v961 = vpack.c.b16 %v947, %v946
    %v962 = vpack.c.b16 %v949, %v948
    %v963 = vpack.c.b16 %v951, %v950
    %v964 = vpack.c.b16 %v953, %v952
    %v965 = vpack.c.b16 %v955, %v954
    %v966 = vpack.c.b16 %v957, %v956
    %v967 = vpack.c.b16 %v959, %v958
    %976 = vmatprep.subr.bf16.mxu0 0
    %977 = vmatpush1.bf16.msra.mxu0 %v960
    %978 = vmatprep.subr.bf16.mxu0 0
    %979 = vmatpush1.bf16.msra.mxu0 %v961
    %980 = vmatprep.subr.bf16.mxu0 0
    %981 = vmatpush1.bf16.msra.mxu0 %v962
    %982 = vmatprep.subr.bf16.mxu0 0
    %983 = vmatpush1.bf16.msra.mxu0 %v963
    %984 = vmatprep.subr.bf16.mxu0 0
    %985 = vmatpush1.bf16.msra.mxu0 %v964
    %986 = vmatprep.subr.bf16.mxu0 0
    %987 = vmatpush1.bf16.msra.mxu0 %v965
    %988 = vmatprep.subr.bf16.mxu0 0
    %989 = vmatpush1.bf16.msra.mxu0 %v966
    %990 = vmatprep.subr.bf16.mxu0 0
    %991 = vmatpush1.bf16.msra.mxu0 %v967
    %992 = vmatprep.subr.bf16.mxu0 0
    %993 = vmatpush1.bf16.msra.mxu0 0
    %994 = vmatprep.subr.bf16.mxu0 0
    %995 = vmatpush1.bf16.msra.mxu0 0
    %996 = vmatprep.subr.bf16.mxu0 0
    %997 = vmatpush1.bf16.msra.mxu0 0
    %998 = vmatprep.subr.bf16.mxu0 0
    %999 = vmatpush1.bf16.msra.mxu0 0
    %1000 = vmatprep.subr.bf16.mxu0 0
    %1001 = vmatpush1.bf16.msra.mxu0 0
    %1002 = vmatprep.subr.bf16.mxu0 0
    %1003 = vmatpush1.bf16.msra.mxu0 0
    %1004 = vmatprep.subr.bf16.mxu0 0
    %1005 = vmatpush1.bf16.msra.mxu0 0
    %1006 = vmatprep.subr.bf16.mxu0 0
    %1007 = vmatpush1.bf16.msra.mxu0 0
    %1008 = vmatprep.mubr.bf16.mxu0 0
    %1009 = vmatmul.mubr.bf16.gmra.mrb[0].mxu0 %v910
    %v1010 = vpop.f32.mrb[0].mxu0
    %v1011 = vadd.f32 0.0, %v1010
    %v1012 = vpop.f32.mrb[0].mxu0
    %v1013 = vpop.f32.mrb[0].mxu0
    %v1014 = vpop.f32.mrb[0].mxu0
    %1015 = vdwg.mxu0
    %v1016 = vmax.f32 %v1011, 0.0
    %v1017 = vpack.c.bf16 %v1016, %v1016
    %s1018 = scalar_lea.vmem [#allocation7], 64
    %v1019 = vld [vmem:[%s1018] sm:$0xf]
    %v1020 = vld [vmem:[%s1018 + $0x4] sm:$0xf]
    %v1021 = vld [vmem:[%s1018 + $0x8] sm:$0xf]
    %v1022 = vld [vmem:[%s1018 + $0xc] sm:$0xf]
    %v1023 = vld [vmem:[%s1018 + $0x10] sm:$0xf]
    %v1024 = vld [vmem:[%s1018 + $0x14] sm:$0xf]
    %v1025 = vld [vmem:[%s1018 + $0x18] sm:$0xf]
    %v1026 = vld [vmem:[%s1018 + $0x1c] sm:$0xf]
    %v1027 = vld [vmem:[%s1018 + $0x20] sm:$0xf]
    %v1028 = vld [vmem:[%s1018 + $0x24] sm:$0xf]
    %v1029 = vld [vmem:[%s1018 + $0x28] sm:$0xf]
    %v1030 = vld [vmem:[%s1018 + $0x2c] sm:$0xf]
    %v1031 = vld [vmem:[%s1018 + $0x30] sm:$0xf]
    %v1032 = vld [vmem:[%s1018 + $0x34] sm:$0xf]
    %v1033 = vld [vmem:[%s1018 + $0x38] sm:$0xf]
    %v1034 = vld [vmem:[%s1018 + $0x3c] sm:$0xf]
    %v1051 = vunpack.c.l.b16 %v1019
    %v1052 = vunpack.c.l.b16 %v1020
    %v1053 = vunpack.c.l.b16 %v1021
    %v1054 = vunpack.c.l.b16 %v1022
    %v1055 = vunpack.c.l.b16 %v1023
    %v1056 = vunpack.c.l.b16 %v1024
    %v1057 = vunpack.c.l.b16 %v1025
    %v1058 = vunpack.c.l.b16 %v1026
    %v1059 = vunpack.c.l.b16 %v1027
    %v1060 = vunpack.c.l.b16 %v1028
    %v1061 = vunpack.c.l.b16 %v1029
    %v1062 = vunpack.c.l.b16 %v1030
    %v1063 = vunpack.c.l.b16 %v1031
    %v1064 = vunpack.c.l.b16 %v1032
    %v1065 = vunpack.c.l.b16 %v1033
    %v1066 = vunpack.c.l.b16 %v1034
    %v1067 = vpack.c.b16 %v1052, %v1051
    %v1068 = vpack.c.b16 %v1054, %v1053
    %v1069 = vpack.c.b16 %v1056, %v1055
    %v1070 = vpack.c.b16 %v1058, %v1057
    %v1071 = vpack.c.b16 %v1060, %v1059
    %v1072 = vpack.c.b16 %v1062, %v1061
    %v1073 = vpack.c.b16 %v1064, %v1063
    %v1074 = vpack.c.b16 %v1066, %v1065
    %1083 = vmatprep.subr.bf16.mxu0 0
    %1084 = vmatpush1.bf16.msra.mxu0 %v1067
    %1085 = vmatprep.subr.bf16.mxu0 0
    %1086 = vmatpush1.bf16.msra.mxu0 %v1068
    %1087 = vmatprep.subr.bf16.mxu0 0
    %1088 = vmatpush1.bf16.msra.mxu0 %v1069
    %1089 = vmatprep.subr.bf16.mxu0 0
    %1090 = vmatpush1.bf16.msra.mxu0 %v1070
    %1091 = vmatprep.subr.bf16.mxu0 0
    %1092 = vmatpush1.bf16.msra.mxu0 %v1071
    %1093 = vmatprep.subr.bf16.mxu0 0
    %1094 = vmatpush1.bf16.msra.mxu0 %v1072
    %1095 = vmatprep.subr.bf16.mxu0 0
    %1096 = vmatpush1.bf16.msra.mxu0 %v1073
    %1097 = vmatprep.subr.bf16.mxu0 0
    %1098 = vmatpush1.bf16.msra.mxu0 %v1074
    %1099 = vmatprep.subr.bf16.mxu0 0
    %1100 = vmatpush1.bf16.msra.mxu0 0
    %1101 = vmatprep.subr.bf16.mxu0 0
    %1102 = vmatpush1.bf16.msra.mxu0 0
    %1103 = vmatprep.subr.bf16.mxu0 0
    %1104 = vmatpush1.bf16.msra.mxu0 0
    %1105 = vmatprep.subr.bf16.mxu0 0
    %1106 = vmatpush1.bf16.msra.mxu0 0
    %1107 = vmatprep.subr.bf16.mxu0 0
    %1108 = vmatpush1.bf16.msra.mxu0 0
    %1109 = vmatprep.subr.bf16.mxu0 0
    %1110 = vmatpush1.bf16.msra.mxu0 0
    %1111 = vmatprep.subr.bf16.mxu0 0
    %1112 = vmatpush1.bf16.msra.mxu0 0
    %1113 = vmatprep.subr.bf16.mxu0 0
    %1114 = vmatpush1.bf16.msra.mxu0 0
    %1115 = vmatprep.mubr.bf16.mxu0 0
    %1116 = vmatmul.mubr.bf16.gmra.mrb[0].mxu0 %v1017
    %v1117 = vpop.f32.mrb[0].mxu0
    %v1118 = vadd.f32 %v115, %v1117
    %v1119 = vpop.f32.mrb[0].mxu0
    %v1120 = vpop.f32.mrb[0].mxu0
    %v1121 = vpop.f32.mrb[0].mxu0
    %1122 = vdwg.mxu0
    %1123 = vadd.xlane.f32.xlu0 %v1118
    %v1124 = vpop.xlane.xlu0 %1123
    %v1125 = vmul.f32 %v1124, 0.010416667
    %v1126 = vsub.f32 %v1118, %v1125
    %v1127 = vmul.f32 %v1126, %v120
    %v1128 = vmul.f32 %v1127, %v1127
    %1129 = vadd.xlane.f32.xlu0 %v1128
    %v1130 = vpop.xlane.xlu0 %1129
    %v1131 = vmul.f32 %v1130, 0.010416667
    %v1132 = vadd.f32 %v1131, 1e-05
    %v1133 = vrsqrt.pop %v1132
    %v1134 = vmul.f32 %v1126, %v1133
    %v1135 = vlaneseq
    %v1136 = vshrl.u32 %v1135, 7
    %v1137 = vsub.s32 1, %v1136
    %v1138 = vrot.slane %v725, %v1137
    %v1139 = vmul.f32 %v1134, %v1138
    %v1140 = vlaneseq
    %v1141 = vshrl.u32 %v1140, 7
    %v1142 = vsub.s32 2, %v1141
    %v1143 = vrot.slane %v725, %v1142
    %v1144 = vadd.f32 %v1139, %v1143
    %v1145 = vlaneseq
    %v1146 = vshrl.u32 %v1145, 7
    %v1147 = vsub.s32 3, %v1146
    %v1148 = vrot.slane %v725, %v1147
    %v1149 = vmul.f32 %v1144, %v1148
    %1150 = vadd.xlane.f32.xlu0 %v1149
    %v1151 = vpop.xlane.xlu0 %1150
    %v1152 = vadd.f32 %v653, %v1151
    %vm1153 = vcmask 228448
    %v1154 = vsel %vm1153, %v163, -inf
    %1155 = vmax.xlane.f32.xlu0 %v1154
    %v1156 = vpop.xlane.xlu0 %1155
    %v1157 = vsub.f32 %v163, %v1156
    %v1158 = vmul.f32 %v1157, 1.442695
    %v1159 = vpow.pop %v1158
    %1161 = vrot.lane.b32.xlu0 %v1159, 116
    %v1162 = vpop.permute.xlu0 %1161
    %vm1164 = vcmask 130048
    %v1165 = vsel %vm1164, %v1162, 0.0
    %1166 = vadd.xlane.f32.xlu0 %v1165
    %v1167 = vpop.xlane.xlu0 %1166
    %v1168 = vrcp.pop %v1167
    %v1169 = vmul.f32 %v1159, %v1168
    %v1170 = vpack.c.bf16 %v1169, %v1169
    %v1171 = vpack.c.bf16 %v123, %v122
    %v1172 = vpack.c.bf16 %v124, %v124
    %1174 = vrot.lane.b32.xlu0 %v1170, 116
    %v1175 = vpop.permute.xlu0 %1174
    %vm1178 = vcmask 1045504
    %v1179 = vrot.slane %v1171, 2
    %v1180 = vrot.slane %v1172, 2
    %v1181 = vsel %vm1178, %v1179, %v1180
    %v1184 = vsel %vm1164, %v1175, 0
    %1186 = vmatprep.subr.bf16.mxu0 0
    %1187 = vmatpush1.bf16.msra.mxu0 %v1181
    %1188 = vmatprep.subr.bf16.mxu0 0
    %1189 = vmatpush1.bf16.msra.mxu0 0
    %1190 = vmatprep.subr.bf16.mxu0 0
    %1191 = vmatpush1.bf16.msra.mxu0 0
    %1192 = vmatprep.subr.bf16.mxu0 0
    %1193 = vmatpush1.bf16.msra.mxu0 0
    %1194 = vmatprep.subr.bf16.mxu0 0
    %1195 = vmatpush1.bf16.msra.mxu0 0
    %1196 = vmatprep.subr.bf16.mxu0 0
    %1197 = vmatpush1.bf16.msra.mxu0 0
    %1198 = vmatprep.subr.bf16.mxu0 0
    %1199 = vmatpush1.bf16.msra.mxu0 0
    %1200 = vmatprep.subr.bf16.mxu0 0
    %1201 = vmatpush1.bf16.msra.mxu0 0
    %1202 = vmatprep.subr.bf16.mxu0 0
    %1203 = vmatpush1.bf16.msra.mxu0 0
    %1204 = vmatprep.subr.bf16.mxu0 0
    %1205 = vmatpush1.bf16.msra.mxu0 0
    %1206 = vmatprep.subr.bf16.mxu0 0
    %1207 = vmatpush1.bf16.msra.mxu0 0
    %1208 = vmatprep.subr.bf16.mxu0 0
    %1209 = vmatpush1.bf16.msra.mxu0 0
    %1210 = vmatprep.subr.bf16.mxu0 0
    %1211 = vmatpush1.bf16.msra.mxu0 0
    %1212 = vmatprep.subr.bf16.mxu0 0
    %1213 = vmatpush1.bf16.msra.mxu0 0
    %1214 = vmatprep.subr.bf16.mxu0 0
    %1215 = vmatpush1.bf16.msra.mxu0 0
    %1216 = vmatprep.subr.bf16.mxu0 0
    %1217 = vmatpush1.bf16.msra.mxu0 0
    %1218 = vmatprep.mubr.bf16.mxu0 0
    %1219 = vmatmul.mubr.bf16.gmra.mrb[0].mxu0 %v1184
    %v1220 = vpop.f32.mrb[0].mxu0
    %v1221 = vadd.f32 0.0, %v1220
    %v1222 = vpop.f32.mrb[0].mxu0
    %v1223 = vpop.f32.mrb[0].mxu0
    %v1224 = vpop.f32.mrb[0].mxu0
    %1225 = vdwg.mxu0
    %s1226 = scalar_lea.vmem %s5, 8
    %v1227 = vld [vmem:[%s1226] sm:$0xf]
    %v1228 = vpack.c.bf16 %v1221, %v1221
    %s1229 = scalar_lea.vmem [#allocation4], 256
    %v1230 = vld [vmem:[%s1229] sm:$0xf]
    %v1231 = vld [vmem:[%s1229 + $0x4] sm:$0xf]
    %v1232 = vld [vmem:[%s1229 + $0x8] sm:$0xf]
    %v1233 = vld [vmem:[%s1229 + $0xc] sm:$0xf]
    %v1234 = vld [vmem:[%s1229 + $0x10] sm:$0xf]
    %v1235 = vld [vmem:[%s1229 + $0x14] sm:$0xf]
    %v1236 = vld [vmem:[%s1229 + $0x18] sm:$0xf]
    %v1237 = vld [vmem:[%s1229 + $0x1c] sm:$0xf]
    %v1238 = vld [vmem:[%s1229 + $0x20] sm:$0xf]
    %v1239 = vld [vmem:[%s1229 + $0x24] sm:$0xf]
    %v1240 = vld [vmem:[%s1229 + $0x28] sm:$0xf]
    %v1241 = vld [vmem:[%s1229 + $0x2c] sm:$0xf]
    %v1242 = vld [vmem:[%s1229 + $0x30] sm:$0xf]
    %v1243 = vld [vmem:[%s1229 + $0x34] sm:$0xf]
    %v1244 = vld [vmem:[%s1229 + $0x38] sm:$0xf]
    %v1245 = vld [vmem:[%s1229 + $0x3c] sm:$0xf]
    %v1246 = vld [vmem:[%s1229 + $0x40] sm:$0xf]
    %v1247 = vld [vmem:[%s1229 + $0x44] sm:$0xf]
    %v1248 = vld [vmem:[%s1229 + $0x48] sm:$0xf]
    %v1249 = vld [vmem:[%s1229 + $0x4c] sm:$0xf]
    %v1250 = vld [vmem:[%s1229 + $0x50] sm:$0xf]
    %v1251 = vld [vmem:[%s1229 + $0x54] sm:$0xf]
    %v1252 = vld [vmem:[%s1229 + $0x58] sm:$0xf]
    %v1253 = vld [vmem:[%s1229 + $0x5c] sm:$0xf]
    %v1254 = vld [vmem:[%s1229 + $0x60] sm:$0xf]
    %v1255 = vld [vmem:[%s1229 + $0x64] sm:$0xf]
    %v1256 = vld [vmem:[%s1229 + $0x68] sm:$0xf]
    %v1257 = vld [vmem:[%s1229 + $0x6c] sm:$0xf]
    %v1258 = vld [vmem:[%s1229 + $0x70] sm:$0xf]
    %v1259 = vld [vmem:[%s1229 + $0x74] sm:$0xf]
    %v1260 = vld [vmem:[%s1229 + $0x78] sm:$0xf]
    %v1261 = vld [vmem:[%s1229 + $0x7c] sm:$0xf]
    %v1262 = vlaneseq
    %v1263 = vshrl.u32 %v1262, 7
    %v1264 = vsub.s32 0, %v1263
    %v1265 = vrot.slane %v1227, %v1264
    %v1298 = vunpack.c.l.b16 %v1230
    %v1299 = vunpack.c.l.b16 %v1231
    %v1300 = vunpack.c.l.b16 %v1232
    %v1301 = vunpack.c.l.b16 %v1233
    %v1302 = vunpack.c.l.b16 %v1234
    %v1303 = vunpack.c.l.b16 %v1235
    %v1304 = vunpack.c.l.b16 %v1236
    %v1305 = vunpack.c.l.b16 %v1237
    %v1306 = vunpack.c.l.b16 %v1238
    %v1307 = vunpack.c.l.b16 %v1239
    %v1308 = vunpack.c.l.b16 %v1240
    %v1309 = vunpack.c.l.b16 %v1241
    %v1310 = vunpack.c.l.b16 %v1242
    %v1311 = vunpack.c.l.b16 %v1243
    %v1312 = vunpack.c.l.b16 %v1244
    %v1313 = vunpack.c.l.b16 %v1245
    %v1314 = vunpack.c.l.b16 %v1246
    %v1315 = vunpack.c.l.b16 %v1247
    %v1316 = vunpack.c.l.b16 %v1248
    %v1317 = vunpack.c.l.b16 %v1249
    %v1318 = vunpack.c.l.b16 %v1250
    %v1319 = vunpack.c.l.b16 %v1251
    %v1320 = vunpack.c.l.b16 %v1252
    %v1321 = vunpack.c.l.b16 %v1253
    %v1322 = vunpack.c.l.b16 %v1254
    %v1323 = vunpack.c.l.b16 %v1255
    %v1324 = vunpack.c.l.b16 %v1256
    %v1325 = vunpack.c.l.b16 %v1257
    %v1326 = vunpack.c.l.b16 %v1258
    %v1327 = vunpack.c.l.b16 %v1259
    %v1328 = vunpack.c.l.b16 %v1260
    %v1329 = vunpack.c.l.b16 %v1261
    %v1330 = vpack.c.b16 %v1299, %v1298
    %v1331 = vpack.c.b16 %v1301, %v1300
    %v1332 = vpack.c.b16 %v1303, %v1302
    %v1333 = vpack.c.b16 %v1305, %v1304
    %v1334 = vpack.c.b16 %v1307, %v1306
    %v1335 = vpack.c.b16 %v1309, %v1308
    %v1336 = vpack.c.b16 %v1311, %v1310
    %v1337 = vpack.c.b16 %v1313, %v1312
    %v1338 = vpack.c.b16 %v1315, %v1314
    %v1339 = vpack.c.b16 %v1317, %v1316
    %v1340 = vpack.c.b16 %v1319, %v1318
    %v1341 = vpack.c.b16 %v1321, %v1320
    %v1342 = vpack.c.b16 %v1323, %v1322
    %v1343 = vpack.c.b16 %v1325, %v1324
    %v1344 = vpack.c.b16 %v1327, %v1326
    %v1345 = vpack.c.b16 %v1329, %v1328
    %1362 = vmatprep.subr.bf16.mxu0 0
    %1363 = vmatpush1.bf16.msra.mxu0 %v1330
    %1364 = vmatprep.subr.bf16.mxu0 0
    %1365 = vmatpush1.bf16.msra.mxu0 %v1331
    %1366 = vmatprep.subr.bf16.mxu0 0
    %1367 = vmatpush1.bf16.msra.mxu0 %v1332
    %1368 = vmatprep.subr.bf16.mxu0 0
    %1369 = vmatpush1.bf16.msra.mxu0 %v1333
    %1370 = vmatprep.subr.bf16.mxu0 0
    %1371 = vmatpush1.bf16.msra.mxu0 %v1334
    %1372 = vmatprep.subr.bf16.mxu0 0
    %1373 = vmatpush1.bf16.msra.mxu0 %v1335
    %1374 = vmatprep.subr.bf16.mxu0 0
    %1375 = vmatpush1.bf16.msra.mxu0 %v1336
    %1376 = vmatprep.subr.bf16.mxu0 0
    %1377 = vmatpush1.bf16.msra.mxu0 %v1337
    %1378 = vmatprep.subr.bf16.mxu0 0
    %1379 = vmatpush1.bf16.msra.mxu0 %v1338
    %1380 = vmatprep.subr.bf16.mxu0 0
    %1381 = vmatpush1.bf16.msra.mxu0 %v1339
    %1382 = vmatprep.subr.bf16.mxu0 0
    %1383 = vmatpush1.bf16.msra.mxu0 %v1340
    %1384 = vmatprep.subr.bf16.mxu0 0
    %1385 = vmatpush1.bf16.msra.mxu0 %v1341
    %1386 = vmatprep.subr.bf16.mxu0 0
    %1387 = vmatpush1.bf16.msra.mxu0 %v1342
    %1388 = vmatprep.subr.bf16.mxu0 0
    %1389 = vmatpush1.bf16.msra.mxu0 %v1343
    %1390 = vmatprep.subr.bf16.mxu0 0
    %1391 = vmatpush1.bf16.msra.mxu0 %v1344
    %1392 = vmatprep.subr.bf16.mxu0 0
    %1393 = vmatpush1.bf16.msra.mxu0 %v1345
    %1394 = vmatprep.mubr.bf16.mxu0 %v1228
    %1395 = vmatmul.mubr.bf16.gmra.mrb[0].mxu0 %v125
    %v1396 = vpop.f32.mrb[0].mxu0
    %v1397 = vadd.f32 %v1265, %v1396
    %v1398 = vpop.f32.mrb[0].mxu0
    %v1399 = vpop.f32.mrb[0].mxu0
    %v1400 = vpop.f32.mrb[0].mxu0
    %1401 = vdwg.mxu0
    %v1402 = vxor.u32 %v1397, 2147483648
    %v1403 = vmul.f32 %v1402, 1.442695
    %v1404 = vpow.pop %v1403
    %v1405 = vadd.f32 %v1404, 1.0
    %v1406 = vrcp.pop %v1405
    %v1407 = vmul.f32 1.0, %v1406
    %v1408 = vmul.f32 %v1407, %v115
    %v1409 = vsub.f32 1.0, %v1407
    %v1410 = vmul.f32 %v1409, %v1221
    %v1411 = vadd.f32 %v1408, %v1410
    %v1412 = vpack.c.bf16 %v1411, %v1411
    %s1413 = scalar_lea.vmem [#allocation6], 128
    %v1414 = vld [vmem:[%s1413] sm:$0xf]
    %v1415 = vld [vmem:[%s1413 + $0x4] sm:$0xf]
    %v1416 = vld [vmem:[%s1413 + $0x8] sm:$0xf]
    %v1417 = vld [vmem:[%s1413 + $0xc] sm:$0xf]
    %v1418 = vld [vmem:[%s1413 + $0x10] sm:$0xf]
    %v1419 = vld [vmem:[%s1413 + $0x14] sm:$0xf]
    %v1420 = vld [vmem:[%s1413 + $0x18] sm:$0xf]
    %v1421 = vld [vmem:[%s1413 + $0x1c] sm:$0xf]
    %v1422 = vld [vmem:[%s1413 + $0x20] sm:$0xf]
    %v1423 = vld [vmem:[%s1413 + $0x24] sm:$0xf]
    %v1424 = vld [vmem:[%s1413 + $0x28] sm:$0xf]
    %v1425 = vld [vmem:[%s1413 + $0x2c] sm:$0xf]
    %v1426 = vld [vmem:[%s1413 + $0x30] sm:$0xf]
    %v1427 = vld [vmem:[%s1413 + $0x34] sm:$0xf]
    %v1428 = vld [vmem:[%s1413 + $0x38] sm:$0xf]
    %v1429 = vld [vmem:[%s1413 + $0x3c] sm:$0xf]
    %v1446 = vunpack.c.l.b16 %v1414
    %v1447 = vunpack.c.l.b16 %v1415
    %v1448 = vunpack.c.l.b16 %v1416
    %v1449 = vunpack.c.l.b16 %v1417
    %v1450 = vunpack.c.l.b16 %v1418
    %v1451 = vunpack.c.l.b16 %v1419
    %v1452 = vunpack.c.l.b16 %v1420
    %v1453 = vunpack.c.l.b16 %v1421
    %v1454 = vunpack.c.l.b16 %v1422
    %v1455 = vunpack.c.l.b16 %v1423
    %v1456 = vunpack.c.l.b16 %v1424
    %v1457 = vunpack.c.l.b16 %v1425
    %v1458 = vunpack.c.l.b16 %v1426
    %v1459 = vunpack.c.l.b16 %v1427
    %v1460 = vunpack.c.l.b16 %v1428
    %v1461 = vunpack.c.l.b16 %v1429
    %v1462 = vpack.c.b16 %v1447, %v1446
    %v1463 = vpack.c.b16 %v1449, %v1448
    %v1464 = vpack.c.b16 %v1451, %v1450
    %v1465 = vpack.c.b16 %v1453, %v1452
    %v1466 = vpack.c.b16 %v1455, %v1454
    %v1467 = vpack.c.b16 %v1457, %v1456
    %v1468 = vpack.c.b16 %v1459, %v1458
    %v1469 = vpack.c.b16 %v1461, %v1460
    %1478 = vmatprep.subr.bf16.mxu0 0
    %1479 = vmatpush1.bf16.msra.mxu0 %v1462
    %1480 = vmatprep.subr.bf16.mxu0 0
    %1481 = vmatpush1.bf16.msra.mxu0 %v1463
    %1482 = vmatprep.subr.bf16.mxu0 0
    %1483 = vmatpush1.bf16.msra.mxu0 %v1464
    %1484 = vmatprep.subr.bf16.mxu0 0
    %1485 = vmatpush1.bf16.msra.mxu0 %v1465
    %1486 = vmatprep.subr.bf16.mxu0 0
    %1487 = vmatpush1.bf16.msra.mxu0 %v1466
    %1488 = vmatprep.subr.bf16.mxu0 0
    %1489 = vmatpush1.bf16.msra.mxu0 %v1467
    %1490 = vmatprep.subr.bf16.mxu0 0
    %1491 = vmatpush1.bf16.msra.mxu0 %v1468
    %1492 = vmatprep.subr.bf16.mxu0 0
    %1493 = vmatpush1.bf16.msra.mxu0 %v1469
    %1494 = vmatprep.subr.bf16.mxu0 0
    %1495 = vmatpush1.bf16.msra.mxu0 0
    %1496 = vmatprep.subr.bf16.mxu0 0
    %1497 = vmatpush1.bf16.msra.mxu0 0
    %1498 = vmatprep.subr.bf16.mxu0 0
    %1499 = vmatpush1.bf16.msra.mxu0 0
    %1500 = vmatprep.subr.bf16.mxu0 0
    %1501 = vmatpush1.bf16.msra.mxu0 0
    %1502 = vmatprep.subr.bf16.mxu0 0
    %1503 = vmatpush1.bf16.msra.mxu0 0
    %1504 = vmatprep.subr.bf16.mxu0 0
    %1505 = vmatpush1.bf16.msra.mxu0 0
    %1506 = vmatprep.subr.bf16.mxu0 0
    %1507 = vmatpush1.bf16.msra.mxu0 0
    %1508 = vmatprep.subr.bf16.mxu0 0
    %1509 = vmatpush1.bf16.msra.mxu0 0
    %1510 = vmatprep.mubr.bf16.mxu0 0
    %1511 = vmatmul.mubr.bf16.gmra.mrb[0].mxu0 %v1412
    %v1512 = vpop.f32.mrb[0].mxu0
    %v1513 = vadd.f32 0.0, %v1512
    %v1514 = vpop.f32.mrb[0].mxu0
    %v1515 = vpop.f32.mrb[0].mxu0
    %v1516 = vpop.f32.mrb[0].mxu0
    %1517 = vdwg.mxu0
    %v1518 = vmax.f32 %v1513, 0.0
    %v1519 = vpack.c.bf16 %v1518, %v1518
    %s1520 = scalar_lea.vmem [#allocation7], 128
    %v1521 = vld [vmem:[%s1520] sm:$0xf]
    %v1522 = vld [vmem:[%s1520 + $0x4] sm:$0xf]
    %v1523 = vld [vmem:[%s1520 + $0x8] sm:$0xf]
    %v1524 = vld [vmem:[%s1520 + $0xc] sm:$0xf]
    %v1525 = vld [vmem:[%s1520 + $0x10] sm:$0xf]
    %v1526 = vld [vmem:[%s1520 + $0x14] sm:$0xf]
    %v1527 = vld [vmem:[%s1520 + $0x18] sm:$0xf]
    %v1528 = vld [vmem:[%s1520 + $0x1c] sm:$0xf]
    %v1529 = vld [vmem:[%s1520 + $0x20] sm:$0xf]
    %v1530 = vld [vmem:[%s1520 + $0x24] sm:$0xf]
    %v1531 = vld [vmem:[%s1520 + $0x28] sm:$0xf]
    %v1532 = vld [vmem:[%s1520 + $0x2c] sm:$0xf]
    %v1533 = vld [vmem:[%s1520 + $0x30] sm:$0xf]
    %v1534 = vld [vmem:[%s1520 + $0x34] sm:$0xf]
    %v1535 = vld [vmem:[%s1520 + $0x38] sm:$0xf]
    %v1536 = vld [vmem:[%s1520 + $0x3c] sm:$0xf]
    %v1553 = vunpack.c.l.b16 %v1521
    %v1554 = vunpack.c.l.b16 %v1522
    %v1555 = vunpack.c.l.b16 %v1523
    %v1556 = vunpack.c.l.b16 %v1524
    %v1557 = vunpack.c.l.b16 %v1525
    %v1558 = vunpack.c.l.b16 %v1526
    %v1559 = vunpack.c.l.b16 %v1527
    %v1560 = vunpack.c.l.b16 %v1528
    %v1561 = vunpack.c.l.b16 %v1529
    %v1562 = vunpack.c.l.b16 %v1530
    %v1563 = vunpack.c.l.b16 %v1531
    %v1564 = vunpack.c.l.b16 %v1532
    %v1565 = vunpack.c.l.b16 %v1533
    %v1566 = vunpack.c.l.b16 %v1534
    %v1567 = vunpack.c.l.b16 %v1535
    %v1568 = vunpack.c.l.b16 %v1536
    %v1569 = vpack.c.b16 %v1554, %v1553
    %v1570 = vpack.c.b16 %v1556, %v1555
    %v1571 = vpack.c.b16 %v1558, %v1557
    %v1572 = vpack.c.b16 %v1560, %v1559
    %v1573 = vpack.c.b16 %v1562, %v1561
    %v1574 = vpack.c.b16 %v1564, %v1563
    %v1575 = vpack.c.b16 %v1566, %v1565
    %v1576 = vpack.c.b16 %v1568, %v1567
    %1585 = vmatprep.subr.bf16.mxu0 0
    %1586 = vmatpush1.bf16.msra.mxu0 %v1569
    %1587 = vmatprep.subr.bf16.mxu0 0
    %1588 = vmatpush1.bf16.msra.mxu0 %v1570
    %1589 = vmatprep.subr.bf16.mxu0 0
    %1590 = vmatpush1.bf16.msra.mxu0 %v1571
    %1591 = vmatprep.subr.bf16.mxu0 0
    %1592 = vmatpush1.bf16.msra.mxu0 %v1572
    %1593 = vmatprep.subr.bf16.mxu0 0
    %1594 = vmatpush1.bf16.msra.mxu0 %v1573
    %1595 = vmatprep.subr.bf16.mxu0 0
    %1596 = vmatpush1.bf16.msra.mxu0 %v1574
    %1597 = vmatprep.subr.bf16.mxu0 0
    %1598 = vmatpush1.bf16.msra.mxu0 %v1575
    %1599 = vmatprep.subr.bf16.mxu0 0
    %1600 = vmatpush1.bf16.msra.mxu0 %v1576
    %1601 = vmatprep.subr.bf16.mxu0 0
    %1602 = vmatpush1.bf16.msra.mxu0 0
    %1603 = vmatprep.subr.bf16.mxu0 0
    %1604 = vmatpush1.bf16.msra.mxu0 0
    %1605 = vmatprep.subr.bf16.mxu0 0
    %1606 = vmatpush1.bf16.msra.mxu0 0
    %1607 = vmatprep.subr.bf16.mxu0 0
    %1608 = vmatpush1.bf16.msra.mxu0 0
    %1609 = vmatprep.subr.bf16.mxu0 0
    %1610 = vmatpush1.bf16.msra.mxu0 0
    %1611 = vmatprep.subr.bf16.mxu0 0
    %1612 = vmatpush1.bf16.msra.mxu0 0
    %1613 = vmatprep.subr.bf16.mxu0 0
    %1614 = vmatpush1.bf16.msra.mxu0 0
    %1615 = vmatprep.subr.bf16.mxu0 0
    %1616 = vmatpush1.bf16.msra.mxu0 0
    %1617 = vmatprep.mubr.bf16.mxu0 0
    %1618 = vmatmul.mubr.bf16.gmra.mrb[0].mxu0 %v1519
    %v1619 = vpop.f32.mrb[0].mxu0
    %v1620 = vadd.f32 %v115, %v1619
    %v1621 = vpop.f32.mrb[0].mxu0
    %v1622 = vpop.f32.mrb[0].mxu0
    %v1623 = vpop.f32.mrb[0].mxu0
    %1624 = vdwg.mxu0
    %1625 = vadd.xlane.f32.xlu0 %v1620
    %v1626 = vpop.xlane.xlu0 %1625
    %v1627 = vmul.f32 %v1626, 0.010416667
    %v1628 = vsub.f32 %v1620, %v1627
    %v1629 = vmul.f32 %v1628, %v120
    %v1630 = vmul.f32 %v1629, %v1629
    %1631 = vadd.xlane.f32.xlu0 %v1630
    %v1632 = vpop.xlane.xlu0 %1631
    %v1633 = vmul.f32 %v1632, 0.010416667
    %v1634 = vadd.f32 %v1633, 1e-05
    %v1635 = vrsqrt.pop %v1634
    %v1636 = vmul.f32 %v1628, %v1635
    %v1637 = vlaneseq
    %v1638 = vshrl.u32 %v1637, 7
    %v1639 = vsub.s32 1, %v1638
    %v1640 = vrot.slane %v1227, %v1639
    %v1641 = vmul.f32 %v1636, %v1640
    %v1642 = vlaneseq
    %v1643 = vshrl.u32 %v1642, 7
    %v1644 = vsub.s32 2, %v1643
    %v1645 = vrot.slane %v1227, %v1644
    %v1646 = vadd.f32 %v1641, %v1645
    %v1647 = vlaneseq
    %v1648 = vshrl.u32 %v1647, 7
    %v1649 = vsub.s32 3, %v1648
    %v1650 = vrot.slane %v1227, %v1649
    %v1651 = vmul.f32 %v1646, %v1650
    %1652 = vadd.xlane.f32.xlu0 %v1651
    %v1653 = vpop.xlane.xlu0 %1652
    %v1654 = vadd.f32 %v1152, %v1653
    %v1655 = vsel %vm168, %v179, %v670
    %vm1656 = vcmask 97280
    %v1657 = vsel %vm1656, %v1655, %v1169
    %v1658 = vld [vmem:[#allocation9] sm:$0xff]
    %v1659 = vld [vmem:[#allocation9 + $0x8] sm:$0xff]
    %v1660 = vld [vmem:[#allocation9 + $0x10] sm:$0xff]
    %v1661 = vld [vmem:[#allocation9 + $0x18] sm:$0xf]
    %vm1662 = vcmask 228352
    %v1664 = vsel %vm1662, %v1657, 0
    %v1667 = vsel %vm680, %v1661, 0
    %1669 = vmatprep.subr.mxu0 0.0
    %1670 = vmatpush1.msra.mxu0 %v1658
    %1671 = vmatprep.subr.mxu0 0.0
    %1672 = vmatpush1.msra.mxu0 %v1659
    %1673 = vmatprep.subr.mxu0 0.0
    %1674 = vmatpush1.msra.mxu0 %v1660
    %1675 = vmatprep.subr.mxu0 0.0
    %1676 = vmatpush1.msra.mxu0 %v1667
    %1677 = vmatprep.subr.mxu0 0.0
    %1678 = vmatpush1.msra.mxu0 0.0
    %1679 = vmatprep.subr.mxu0 0.0
    %1680 = vmatpush1.msra.mxu0 0.0
    %1681 = vmatprep.subr.mxu0 0.0
    %1682 = vmatpush1.msra.mxu0 0.0
    %1683 = vmatprep.subr.mxu0 0.0
    %1684 = vmatpush1.msra.mxu0 0.0
    %1685 = vmatprep.subr.mxu0 0.0
    %1686 = vmatpush1.msra.mxu0 0.0
    %1687 = vmatprep.subr.mxu0 0.0
    %1688 = vmatpush1.msra.mxu0 0.0
    %1689 = vmatprep.subr.mxu0 0.0
    %1690 = vmatpush1.msra.mxu0 0.0
    %1691 = vmatprep.subr.mxu0 0.0
    %1692 = vmatpush1.msra.mxu0 0.0
    %1693 = vmatprep.subr.mxu0 0.0
    %1694 = vmatpush1.msra.mxu0 0.0
    %1695 = vmatprep.subr.mxu0 0.0
    %1696 = vmatpush1.msra.mxu0 0.0
    %1697 = vmatprep.subr.mxu0 0.0
    %1698 = vmatpush1.msra.mxu0 0.0
    %1699 = vmatprep.subr.mxu0 0.0
    %1700 = vmatpush1.msra.mxu0 0.0
    %1701 = vmatprep.subr.mxu0 0.0
    %1702 = vmatpush1.msra.mxu0 0.0
    %1703 = vmatprep.subr.mxu0 0.0
    %1704 = vmatpush1.msra.mxu0 0.0
    %1705 = vmatprep.subr.mxu0 0.0
    %1706 = vmatpush1.msra.mxu0 0.0
    %1707 = vmatprep.subr.mxu0 0.0
    %1708 = vmatpush1.msra.mxu0 0.0
    %1709 = vmatprep.subr.mxu0 0.0
    %1710 = vmatpush1.msra.mxu0 0.0
    %1711 = vmatprep.subr.mxu0 0.0
    %1712 = vmatpush1.msra.mxu0 0.0
    %1713 = vmatprep.subr.mxu0 0.0
    %1714 = vmatpush1.msra.mxu0 0.0
    %1715 = vmatprep.subr.mxu0 0.0
    %1716 = vmatpush1.msra.mxu0 0.0
    %1717 = vmatprep.subr.mxu0 0.0
    %1718 = vmatpush1.msra.mxu0 0.0
    %1719 = vmatprep.subr.mxu0 0.0
    %1720 = vmatpush1.msra.mxu0 0.0
    %1721 = vmatprep.subr.mxu0 0.0
    %1722 = vmatpush1.msra.mxu0 0.0
    %1723 = vmatprep.subr.mxu0 0.0
    %1724 = vmatpush1.msra.mxu0 0.0
    %1725 = vmatprep.subr.mxu0 0.0
    %1726 = vmatpush1.msra.mxu0 0.0
    %1727 = vmatprep.subr.mxu0 0.0
    %1728 = vmatpush1.msra.mxu0 0.0
    %1729 = vmatprep.subr.mxu0 0.0
    %1730 = vmatpush1.msra.mxu0 0.0
    %1731 = vmatprep.subr.mxu0 0.0
    %1732 = vmatpush1.msra.mxu0 0.0
    %1733 = vmatprep.mubr.f32.mxu0 0.0
    %1734 = vmatmul.mubr.f32.gmra.mrb[0].mxu0 %v1664
    %v1735 = vpop.f32.mrb[0].mxu0
    %v1736 = vadd.f32 0.0, %v1735
    %v1737 = vpop.f32.mrb[0].mxu0
    %1738 = vdwg.mxu0
    %v1739 = vsel %vm665, %v1736, -inf
    %1740 = vmax.xlane.f32.xlu0 %v1739
    %v1741 = vpop.xlane.xlu0 %1740
    %v1742 = vsub.f32 %v1736, %v1741
    %v1743 = vmul.f32 %v1742, 1.442695
    %v1744 = vpow.pop %v1743
    %v1745 = vsel %vm665, %v1744, 0.0
    %1746 = vadd.xlane.f32.xlu0 %v1745
    %v1747 = vpop.xlane.xlu0 %1746
    %v1748 = vrcp.pop %v1747
    %v1749 = vmul.f32 %v1744, %v1748
    %vm1750 = vcmask 195648
    %v1751 = vsel %vm1750, %v1736, -inf
    %1752 = vmax.xlane.f32.xlu0 %v1751
    %v1753 = vpop.xlane.xlu0 %1752
    %v1754 = vsub.f32 %v1736, %v1753
    %v1755 = vmul.f32 %v1754, 1.442695
    %v1756 = vpow.pop %v1755
    %1758 = vrot.lane.b32.xlu0 %v1756, 120
    %v1759 = vpop.permute.xlu0 %1758
    %v1761 = vsel %vm1164, %v1759, 0.0
    %1762 = vadd.xlane.f32.xlu0 %v1761
    %v1763 = vpop.xlane.xlu0 %1762
    %v1764 = vrcp.pop %v1763
    %v1765 = vmul.f32 %v1756, %v1764
    %v1766 = vsel %vm680, %v1654, -inf
    %v1767 = vrot.slane %v1766, 4
    %v1768 = vmax.f32 %v1766, %v1767
    %v1769 = vrot.slane %v1768, 2
    %v1770 = vmax.f32 %v1768, %v1769
    %v1771 = vrot.slane %v1770, 1
    %v1772 = vmax.f32 %v1770, %v1771
    %v1773 = vsub.f32 %v1654, %v1772
    %v1774 = vmul.f32 %v1773, 1.442695
    %v1775 = vpow.pop %v1774
    %v1776 = vsel %vm680, %v1775, 0.0
    %v1777 = vrot.slane %v1776, 4
    %v1778 = vadd.f32 %v1776, %v1777
    %v1779 = vrot.slane %v1778, 2
    %v1780 = vadd.f32 %v1778, %v1779
    %v1781 = vrot.slane %v1780, 1
    %v1782 = vadd.f32 %v1780, %v1781
    %v1783 = vrcp.pop %v1782
    %v1784 = vmul.f32 %v1775, %v1783
    %v1785 = vmul.f32 %v1784, %v645
    %v1786 = vmul.f32 %v1784, %v1144
    %v1787 = vmul.f32 %v1784, %v1646
    %v1788 = vsel %vm680, %v1785, 0.0
    %v1789 = vrot.slane %v1788, 4
    %v1790 = vadd.f32 %v1788, %v1789
    %v1791 = vrot.slane %v1790, 2
    %v1792 = vadd.f32 %v1790, %v1791
    %v1793 = vrot.slane %v1792, 1
    %v1794 = vadd.f32 %v1792, %v1793
    %v1795 = vsel %vm680, %v1786, 0.0
    %v1796 = vrot.slane %v1795, 4
    %v1797 = vadd.f32 %v1795, %v1796
    %v1798 = vrot.slane %v1797, 2
    %v1799 = vadd.f32 %v1797, %v1798
    %v1800 = vrot.slane %v1799, 1
    %v1801 = vadd.f32 %v1799, %v1800
    %v1802 = vsel %vm680, %v1787, 0.0
    %v1803 = vrot.slane %v1802, 4
    %v1804 = vadd.f32 %v1802, %v1803
    %v1805 = vrot.slane %v1804, 2
    %v1806 = vadd.f32 %v1804, %v1805
    %v1807 = vrot.slane %v1806, 1
    %v1808 = vadd.f32 %v1806, %v1807
    %vm1809 = vcmask 1047556
    %v1810 = vsel %vm1809, %v1654, -inf
    %v1811 = vrot.slane %v1810, 4
    %v1812 = vmax.f32 %v1810, %v1811
    %v1813 = vrot.slane %v1812, 2
    %v1814 = vmax.f32 %v1812, %v1813
    %v1815 = vrot.slane %v1814, 1
    %v1816 = vmax.f32 %v1814, %v1815
    %v1817 = vsub.f32 %v1654, %v1816
    %v1818 = vmul.f32 %v1817, 1.442695
    %v1819 = vpow.pop %v1818
    %v1821 = vrot.slane %v1819, 4
    %v1823 = vsel %vm680, %v1821, 0.0
    %v1824 = vrot.slane %v1823, 4
    %v1825 = vadd.f32 %v1823, %v1824
    %v1826 = vrot.slane %v1825, 2
    %v1827 = vadd.f32 %v1825, %v1826
    %v1828 = vrot.slane %v1827, 1
    %v1829 = vadd.f32 %v1827, %v1828
    %v1830 = vrcp.pop %v1829
    %v1831 = vmul.f32 %v1819, %v1830
    %v1832 = vmul.f32 %v1831, %v645
    %v1833 = vmul.f32 %v1831, %v1144
    %v1834 = vmul.f32 %v1831, %v1646
    %v1838 = vrot.slane %v1832, 4
    %v1839 = vrot.slane %v1833, 4
    %v1840 = vrot.slane %v1834, 4
    %v1844 = vsel %vm680, %v1838, 0.0
    %v1845 = vrot.slane %v1844, 4
    %v1846 = vadd.f32 %v1844, %v1845
    %v1847 = vrot.slane %v1846, 2
    %v1848 = vadd.f32 %v1846, %v1847
    %v1849 = vrot.slane %v1848, 1
    %v1850 = vadd.f32 %v1848, %v1849
    %v1851 = vsel %vm680, %v1839, 0.0
    %v1852 = vrot.slane %v1851, 4
    %v1853 = vadd.f32 %v1851, %v1852
    %v1854 = vrot.slane %v1853, 2
    %v1855 = vadd.f32 %v1853, %v1854
    %v1856 = vrot.slane %v1855, 1
    %v1857 = vadd.f32 %v1855, %v1856
    %v1858 = vsel %vm680, %v1840, 0.0
    %v1859 = vrot.slane %v1858, 4
    %v1860 = vadd.f32 %v1858, %v1859
    %v1861 = vrot.slane %v1860, 2
    %v1862 = vadd.f32 %v1860, %v1861
    %v1863 = vrot.slane %v1862, 1
    %v1864 = vadd.f32 %v1862, %v1863
    %vm1865 = vcmask 1040384
    %v1866 = vsel %vm1865, %v1794, %v1850
    %v1867 = vsel %vm1865, %v1801, %v1857
    %v1868 = vsel %vm1865, %v1808, %v1864
    %v1869 = vld [vmem:[#allocation10] sm:$0xff]
    %v1870 = vld [vmem:[#allocation10 + $0x8] sm:$0xff]
    %v1871 = vld [vmem:[#allocation10 + $0x10] sm:$0xff]
    %v1872 = vld [vmem:[#allocation10 + $0x18] sm:$0xff]
    %v1873 = vld [vmem:[#allocation10 + $0x20] sm:$0xff]
    %v1874 = vld [vmem:[#allocation10 + $0x28] sm:$0xff]
    %v1875 = vld [vmem:[#allocation10 + $0x30] sm:$0xff]
    %v1876 = vld [vmem:[#allocation10 + $0x38] sm:$0xff]
    %v1877 = vld [vmem:[#allocation10 + $0x40] sm:$0xff]
    %v1878 = vld [vmem:[#allocation10 + $0x48] sm:$0xff]
    %v1879 = vld [vmem:[#allocation10 + $0x50] sm:$0xff]
    %v1880 = vld [vmem:[#allocation10 + $0x58] sm:$0xff]
    %v1881 = vld [vmem:[#allocation10 + $0x60] sm:$0xff]
    %v1882 = vld [vmem:[#allocation10 + $0x68] sm:$0xff]
    %v1883 = vld [vmem:[#allocation10 + $0x70] sm:$0xff]
    %v1884 = vld [vmem:[#allocation10 + $0x78] sm:$0xff]
    %v1885 = vld [vmem:[#allocation10 + $0x80] sm:$0xff]
    %v1886 = vld [vmem:[#allocation10 + $0x88] sm:$0xff]
    %v1887 = vld [vmem:[#allocation10 + $0x90] sm:$0xff]
    %v1888 = vld [vmem:[#allocation10 + $0x98] sm:$0xff]
    %v1889 = vld [vmem:[#allocation10 + $0xa0] sm:$0xff]
    %v1890 = vld [vmem:[#allocation10 + $0xa8] sm:$0xff]
    %v1891 = vld [vmem:[#allocation10 + $0xb0] sm:$0xff]
    %v1892 = vld [vmem:[#allocation10 + $0xb8] sm:$0xff]
    %v1893 = vld [vmem:[#allocation10 + $0xc0] sm:$0xff]
    %v1894 = vld [vmem:[#allocation10 + $0xc8] sm:$0xff]
    %v1895 = vld [vmem:[#allocation10 + $0xd0] sm:$0xff]
    %v1896 = vld [vmem:[#allocation10 + $0xd8] sm:$0xff]
    %v1897 = vld [vmem:[#allocation10 + $0xe0] sm:$0xff]
    %v1898 = vld [vmem:[#allocation10 + $0xe8] sm:$0xff]
    %v1899 = vld [vmem:[#allocation10 + $0xf0] sm:$0xff]
    %v1900 = vld [vmem:[#allocation10 + $0xf8] sm:$0xff]
    %v1901 = vld [vmem:[#allocation10 + $0x100] sm:$0xff]
    %v1902 = vld [vmem:[#allocation10 + $0x108] sm:$0xff]
    %v1903 = vld [vmem:[#allocation10 + $0x110] sm:$0xff]
    %v1904 = vld [vmem:[#allocation10 + $0x118] sm:$0xff]
    %v1905 = vld [vmem:[#allocation10 + $0x120] sm:$0xff]
    %v1906 = vld [vmem:[#allocation10 + $0x128] sm:$0xff]
    %v1907 = vld [vmem:[#allocation10 + $0x130] sm:$0xff]
    %v1908 = vld [vmem:[#allocation10 + $0x138] sm:$0xff]
    %v1909 = vld [vmem:[#allocation10 + $0x140] sm:$0xff]
    %v1910 = vld [vmem:[#allocation10 + $0x148] sm:$0xff]
    %v1911 = vld [vmem:[#allocation10 + $0x150] sm:$0xff]
    %v1912 = vld [vmem:[#allocation10 + $0x158] sm:$0xff]
    %v1913 = vld [vmem:[#allocation10 + $0x160] sm:$0xff]
    %v1914 = vld [vmem:[#allocation10 + $0x168] sm:$0xff]
    %v1915 = vld [vmem:[#allocation10 + $0x170] sm:$0xff]
    %v1916 = vld [vmem:[#allocation10 + $0x178] sm:$0xff]
    %v1917 = vld [vmem:[%s8] sm:$0x1]
    %v1919 = vlaneseq
    %v1920 = vshrl.u32 %v1919, 7
    %v1921 = vsub.s32 0, %v1920
    %v1922 = vrot.slane %v1917, %v1921
    %1924 = vmatprep.subr.mxu0 0.0
    %1925 = vmatpush1.msra.mxu0 %v1869
    %1926 = vmatprep.subr.mxu0 0.0
    %1927 = vmatpush1.msra.mxu0 %v1870
    %1928 = vmatprep.subr.mxu0 0.0
    %1929 = vmatpush1.msra.mxu0 %v1871
    %1930 = vmatprep.subr.mxu0 0.0
    %1931 = vmatpush1.msra.mxu0 %v1872
    %1932 = vmatprep.subr.mxu0 0.0
    %1933 = vmatpush1.msra.mxu0 %v1873
    %1934 = vmatprep.subr.mxu0 0.0
    %1935 = vmatpush1.msra.mxu0 %v1874
    %1936 = vmatprep.subr.mxu0 0.0
    %1937 = vmatpush1.msra.mxu0 %v1875
    %1938 = vmatprep.subr.mxu0 0.0
    %1939 = vmatpush1.msra.mxu0 %v1876
    %1940 = vmatprep.subr.mxu0 0.0
    %1941 = vmatpush1.msra.mxu0 %v1877
    %1942 = vmatprep.subr.mxu0 0.0
    %1943 = vmatpush1.msra.mxu0 %v1878
    %1944 = vmatprep.subr.mxu0 0.0
    %1945 = vmatpush1.msra.mxu0 %v1879
    %1946 = vmatprep.subr.mxu0 0.0
    %1947 = vmatpush1.msra.mxu0 %v1880
    %1948 = vmatprep.subr.mxu0 0.0
    %1949 = vmatpush1.msra.mxu0 %v1881
    %1950 = vmatprep.subr.mxu0 0.0
    %1951 = vmatpush1.msra.mxu0 %v1882
    %1952 = vmatprep.subr.mxu0 0.0
    %1953 = vmatpush1.msra.mxu0 %v1883
    %1954 = vmatprep.subr.mxu0 0.0
    %1955 = vmatpush1.msra.mxu0 %v1884
    %1956 = vmatprep.subr.mxu0 0.0
    %1957 = vmatpush1.msra.mxu0 %v1885
    %1958 = vmatprep.subr.mxu0 0.0
    %1959 = vmatpush1.msra.mxu0 %v1886
    %1960 = vmatprep.subr.mxu0 0.0
    %1961 = vmatpush1.msra.mxu0 %v1887
    %1962 = vmatprep.subr.mxu0 0.0
    %1963 = vmatpush1.msra.mxu0 %v1888
    %1964 = vmatprep.subr.mxu0 0.0
    %1965 = vmatpush1.msra.mxu0 %v1889
    %1966 = vmatprep.subr.mxu0 0.0
    %1967 = vmatpush1.msra.mxu0 %v1890
    %1968 = vmatprep.subr.mxu0 0.0
    %1969 = vmatpush1.msra.mxu0 %v1891
    %1970 = vmatprep.subr.mxu0 0.0
    %1971 = vmatpush1.msra.mxu0 %v1892
    %1972 = vmatprep.subr.mxu0 0.0
    %1973 = vmatpush1.msra.mxu0 %v1893
    %1974 = vmatprep.subr.mxu0 0.0
    %1975 = vmatpush1.msra.mxu0 %v1894
    %1976 = vmatprep.subr.mxu0 0.0
    %1977 = vmatpush1.msra.mxu0 %v1895
    %1978 = vmatprep.subr.mxu0 0.0
    %1979 = vmatpush1.msra.mxu0 %v1896
    %1980 = vmatprep.subr.mxu0 0.0
    %1981 = vmatpush1.msra.mxu0 %v1897
    %1982 = vmatprep.subr.mxu0 0.0
    %1983 = vmatpush1.msra.mxu0 %v1898
    %1984 = vmatprep.subr.mxu0 0.0
    %1985 = vmatpush1.msra.mxu0 %v1899
    %1986 = vmatprep.subr.mxu0 0.0
    %1987 = vmatpush1.msra.mxu0 %v1900
    %1988 = vmatprep.mubr.f32.mxu0 %v1867
    %1989 = vmatmul.mubr.f32.gmra.mrb[0].mxu0 %v1866
    %v1990 = vpop.f32.mrb[0].mxu0
    %v1991 = vadd.f32 %v1922, %v1990
    %v1992 = vpop.f32.mrb[0].mxu0
    %1993 = vdwg.mxu0
    %1994 = vmatprep.subr.mxu0 0.0
    %1995 = vmatpush1.msra.mxu0 %v1901
    %1996 = vmatprep.subr.mxu0 0.0
    %1997 = vmatpush1.msra.mxu0 %v1902
    %1998 = vmatprep.subr.mxu0 0.0
    %1999 = vmatpush1.msra.mxu0 %v1903
    %2000 = vmatprep.subr.mxu0 0.0
    %2001 = vmatpush1.msra.mxu0 %v1904
    %2002 = vmatprep.subr.mxu0 0.0
    %2003 = vmatpush1.msra.mxu0 %v1905
    %2004 = vmatprep.subr.mxu0 0.0
    %2005 = vmatpush1.msra.mxu0 %v1906
    %2006 = vmatprep.subr.mxu0 0.0
    %2007 = vmatpush1.msra.mxu0 %v1907
    %2008 = vmatprep.subr.mxu0 0.0
    %2009 = vmatpush1.msra.mxu0 %v1908
    %2010 = vmatprep.subr.mxu0 0.0
    %2011 = vmatpush1.msra.mxu0 %v1909
    %2012 = vmatprep.subr.mxu0 0.0
    %2013 = vmatpush1.msra.mxu0 %v1910
    %2014 = vmatprep.subr.mxu0 0.0
    %2015 = vmatpush1.msra.mxu0 %v1911
    %2016 = vmatprep.subr.mxu0 0.0
    %2017 = vmatpush1.msra.mxu0 %v1912
    %2018 = vmatprep.subr.mxu0 0.0
    %2019 = vmatpush1.msra.mxu0 %v1913
    %2020 = vmatprep.subr.mxu0 0.0
    %2021 = vmatpush1.msra.mxu0 %v1914
    %2022 = vmatprep.subr.mxu0 0.0
    %2023 = vmatpush1.msra.mxu0 %v1915
    %2024 = vmatprep.subr.mxu0 0.0
    %2025 = vmatpush1.msra.mxu0 %v1916
    %2026 = vmatprep.subr.mxu0 0.0
    %2027 = vmatpush1.msra.mxu0 0.0
    %2028 = vmatprep.subr.mxu0 0.0
    %2029 = vmatpush1.msra.mxu0 0.0
    %2030 = vmatprep.subr.mxu0 0.0
    %2031 = vmatpush1.msra.mxu0 0.0
    %2032 = vmatprep.subr.mxu0 0.0
    %2033 = vmatpush1.msra.mxu0 0.0
    %2034 = vmatprep.subr.mxu0 0.0
    %2035 = vmatpush1.msra.mxu0 0.0
    %2036 = vmatprep.subr.mxu0 0.0
    %2037 = vmatpush1.msra.mxu0 0.0
    %2038 = vmatprep.subr.mxu0 0.0
    %2039 = vmatpush1.msra.mxu0 0.0
    %2040 = vmatprep.subr.mxu0 0.0
    %2041 = vmatpush1.msra.mxu0 0.0
    %2042 = vmatprep.subr.mxu0 0.0
    %2043 = vmatpush1.msra.mxu0 0.0
    %2044 = vmatprep.subr.mxu0 0.0
    %2045 = vmatpush1.msra.mxu0 0.0
    %2046 = vmatprep.subr.mxu0 0.0
    %2047 = vmatpush1.msra.mxu0 0.0
    %2048 = vmatprep.subr.mxu0 0.0
    %2049 = vmatpush1.msra.mxu0 0.0
    %2050 = vmatprep.subr.mxu0 0.0
    %2051 = vmatpush1.msra.mxu0 0.0
    %2052 = vmatprep.subr.mxu0 0.0
    %2053 = vmatpush1.msra.mxu0 0.0
    %2054 = vmatprep.subr.mxu0 0.0
    %2055 = vmatpush1.msra.mxu0 0.0
    %2056 = vmatprep.subr.mxu0 0.0
    %2057 = vmatpush1.msra.mxu0 0.0
    %2058 = vmatprep.mubr.f32.mxu0 0.0
    %2059 = vmatmul.mubr.f32.gmra.mrb[0].mxu0 %v1868
    %v2060 = vpop.f32.mrb[0].mxu0
    %v2061 = vadd.f32 %v1991, %v2060
    %v2062 = vpop.f32.mrb[0].mxu0
    %2063 = vdwg.mxu0
    %v2064 = vsel %vm185, %v2061, 0.0
    %2066 = vrot.lane.b32.xlu0 %v1749, 32
    %v2067 = vpop.permute.xlu0 %2066
    %2070 = vrot.lane.b32.xlu0 %v1765, 32
    %v2071 = vpop.permute.xlu0 %2070
    %2074 = vrot.lane.b32.xlu0 %v1736, 32
    %v2075 = vpop.permute.xlu0 %2074
    %2078 = vrot.lane.b32.xlu0 %v2064, 68
    %v2079 = vpop.permute.xlu0 %2078
    %vm2081 = vcmask 261120
    %v2082 = vsel %vm2081, %v163, %v2067
    %vm2083 = vcmask 326656
    %v2084 = vsel %vm2083, %v2082, %v2071
    %vm2085 = vcmask 457728
    %v2086 = vsel %vm2085, %v2084, %v2075
    %vm2087 = vcmask 490496
    %v2088 = vsel %vm2087, %v2086, %v2075
    %vm2089 = vcmask 556032
    %v2090 = vsel %vm2089, %v2088, %v2079
    %vm2091 = vcmask 687104
    %v2092 = vsel %vm2091, %v2090, 0.0
    %2093 = vst [vmem:[%s9] sm:$0xff] %v2092
    // Predicated region
    $region62: #{forward.1} parent=1 // pred_check
      _
    $region63: #{forward.1} parent=1 // pred_check_branch
      %2095 = sbr.rel (0) target = $region65
    $region64: #{forward.1} parent=1 // pred_region
      _
    $region65: #{forward.1} parent=1 // pred_fallthru
      _
    // Predicated region
    $region66: #{forward.1} parent=1 // pred_check
      _
    $region67: #{forward.1} parent=1 // pred_check_branch
      %2097 = sbr.rel (0) target = $region69
    $region68: #{forward.1} parent=1 // pred_region
      _
    $region69: #{forward.1} parent=1 // pred_fallthru
      _
    %2098 = vsyncpa [#allocation3], 1
    %2099 = vsyncpa [#allocation5], 1
    %2100 = vsyncpa [#allocation8], 1
    %2101 = vsyncpa [#allocation11], 1

</llo_original>
